<compile_context>
chip_gen: v6e
topology: v6e:2x2x1
jax: 0.10.0
libtpu: 0.0.40
codegen_flags: <defaults>
</compile_context>

<pallas_src>
import functools

import jax
import jax.numpy as jnp
from jax.experimental import pallas as pl
from jax.experimental.pallas import tpu as pltpu


_BLOCK_BYTES_TARGET = 4 * 1024 * 1024   # per input block (== per output block)
_VMEM_CAP = 48 * 1024 * 1024            # stay under v7x's 64 MiB physical VMEM


def _pick_cblk(n_ch, bytes_per_ch, batch, cap=None):
    """Largest divisor of n_ch whose block fits the budget (>=2 grid steps if possible)."""
    max_c = max(1, _BLOCK_BYTES_TARGET // max(1, bytes_per_ch))
    if cap is not None:
        max_c = min(max_c, cap)
    max_c = int(min(max_c, n_ch))
    # keep >= 2 grid steps when possible so v7x's two TensorCores both get work
    if batch < 2 and n_ch > 1:
        max_c = min(max_c, max(1, n_ch // 2))
    for d in range(max_c, 0, -1):
        if n_ch % d == 0:
            return d
    return 1


def _mm_dtype(dtype):
    # one-hot 0/1 matmul is exact in bf16 and f32; route other floats via f32.
    if dtype in (jnp.float32, jnp.bfloat16):
        return dtype
    return jnp.float32


# ----------------------- one-hot lane permutation matrices ----------------------
def _squeeze_perm(f, W, dtype):
    # P[w, fj*Wo + j] = 1 iff w == f*j + fj   (lane gather; fj-major output lanes)
    Wo = W // f
    w = jax.lax.broadcasted_iota(jnp.int32, (W, W), 0)
    col = jax.lax.broadcasted_iota(jnp.int32, (W, W), 1)
    fj = col // Wo
    j = col % Wo
    return (w == f * j + fj).astype(dtype)


def _unsqueeze_scatter(f, W, dtype):
    # St[fj, j, ww] = 1 iff ww == f*j + fj    (lane scatter into the widened row)
    Wf = W * f
    fj = jax.lax.broadcasted_iota(jnp.int32, (f, W, Wf), 0)
    j = jax.lax.broadcasted_iota(jnp.int32, (f, W, Wf), 1)
    ww = jax.lax.broadcasted_iota(jnp.int32, (f, W, Wf), 2)
    return (ww == f * j + fj).astype(dtype)


# --------------------------------- kernels ---------------------------------------
def _squeeze_kernel(x_ref, p_ref, o_ref, *, f, cblk, Ho, Wo, W, fast):
    # x_ref: (cblk*Ho, f*W)   rows = (c, i), lanes = (fi, w)      [contiguous DMA]
    # o_ref: (cblk, f, f, Ho, Wo)
    p = p_ref[...]                                              # (W, W), resident
    for fi in range(f):
        sub = x_ref[:, fi * W:(fi + 1) * W]                     # (cblk*Ho, W)
        y = jnp.dot(sub.astype(p.dtype), p,
                    preferred_element_type=jnp.float32,
                    precision=jax.lax.Precision.HIGHEST)        # (cblk*Ho, W), lanes (fj, j)
        y = y.astype(o_ref.dtype)
        for fj in range(f):
            blk = y[:, fj * Wo:(fj + 1) * Wo]                   # (cblk*Ho, Wo)
            if fast:
                o_ref[:, fi, fj, :, :] = blk.reshape(cblk, Ho, Wo)
            else:
                for c in range(cblk):                           # cblk capped small here
                    o_ref[c, fi, fj, :, :] = blk[c * Ho:(c + 1) * Ho, :]


def _unsqueeze_kernel(x_ref, st_ref, o_ref, *, f, cblk, H, W, Wf, fast):
    # x_ref: (cblk, f*f*H, W)  -> o_ref: (cblk, H, f*Wf)   (lanes = (fi, ww))
    st = [st_ref[fj] for fj in range(f)]                        # (W, Wf) each, hoisted
    if fast:
        for fi in range(f):
            acc = None
            for fj in range(f):
                k = fi * f + fj
                sub = x_ref[:, k * H:(k + 1) * H, :]            # (cblk, H, W)
                sub = sub.reshape(cblk * H, W).astype(st[fj].dtype)
                part = jnp.dot(sub, st[fj],
                               preferred_element_type=jnp.float32,
                               precision=jax.lax.Precision.HIGHEST)   # (cblk*H, Wf)
                acc = part if acc is None else acc + part       # disjoint lanes
            o_ref[:, :, fi * Wf:(fi + 1) * Wf] = (
                acc.astype(o_ref.dtype).reshape(cblk, H, Wf))
    else:
        for c in range(cblk):                                   # cblk capped small here
            for fi in range(f):
                acc = None
                for fj in range(f):
                    k = fi * f + fj
                    sub = x_ref[c, k * H:(k + 1) * H, :].astype(st[fj].dtype)   # (H, W)
                    part = jnp.dot(sub, st[fj],
                                   preferred_element_type=jnp.float32,
                                   precision=jax.lax.Precision.HIGHEST)
                    acc = part if acc is None else acc + part
                o_ref[c, :, fi * Wf:(fi + 1) * Wf] = acc.astype(o_ref.dtype)


# --------------------------------- wrapper ---------------------------------------
def squeeze_ts(x, factor=2, reverse=False):
    """Pallas equivalent of SqueezeTS(factor).forward(x, reverse)."""
    assert isinstance(factor, int) and factor > 1, 'no point of using this if factor <= 1'
    if x.ndim != 4:
        raise NotImplementedError
    if not jnp.issubdtype(x.dtype, jnp.floating):
        # TODO(synk): integer dtypes would need an exact non-MXU permutation path.
        raise NotImplementedError("squeeze_ts Pallas kernel supports floating dtypes only")

    f = factor
    B, C, H, W = x.shape
    itemsize = jnp.dtype(x.dtype).itemsize
    mdt = _mm_dtype(x.dtype)

    if not reverse:
        assert H % f == 0 and W % f == 0
        Ho, Wo = H // f, W // f
        fast = (Ho % 8 == 0)                       # layout-trivial value reshapes
        cblk = _pick_cblk(C, H * W * itemsize, B, cap=None if fast else 8)
        G = C // cblk
        P = _squeeze_perm(f, W, mdt)
        # metadata-only: (B, C, H, W) -> (B, G, cblk*Ho, f*W)   (rows (c,i), lanes (fi,w))
        xv = x.reshape(B, G, cblk * Ho, f * W)
        kernel = functools.partial(_squeeze_kernel, f=f, cblk=cblk,
                                   Ho=Ho, Wo=Wo, W=W, fast=fast)
        blk_bytes = cblk * H * W * itemsize
        vmem_limit = int(min(_VMEM_CAP, max(32 << 20, 6 * blk_bytes)))
        y6 = pl.pallas_call(
            kernel,
            out_shape=jax.ShapeDtypeStruct((B, C, f, f, Ho, Wo), x.dtype),
            grid=(B, G),
            in_specs=[
                pl.BlockSpec((None, None, cblk * Ho, f * W), lambda b, g: (b, g, 0, 0)),
                pl.BlockSpec((W, W), lambda b, g: (0, 0)),
            ],
            out_specs=pl.BlockSpec((None, cblk, f, f, Ho, Wo),
                                   lambda b, g: (b, g, 0, 0, 0, 0)),
            compiler_params=pltpu.CompilerParams(
                dimension_semantics=("parallel", "parallel"),
                vmem_limit_bytes=vmem_limit),
        )(xv, P)
        # metadata-only merge of (C, f, f) -> C*f*f
        return y6.reshape(B, C * f * f, Ho, Wo)
    else:
        # mirrors the PyTorch module's assert
        assert C >= 4 and C % 4 == 0
        assert C % (f * f) == 0
        Co = C // (f * f)
        Hf, Wf = H * f, W * f
        fast = (H % 8 == 0)
        cblk = _pick_cblk(Co, f * f * H * W * itemsize, B, cap=None if fast else 8)
        Go = Co // cblk
        St = _unsqueeze_scatter(f, W, mdt)
        # metadata-only: (B, Co*f*f, H, W) -> (B, Co, f*f*H, W)
        xv = x.reshape(B, Co, f * f * H, W)
        kernel = functools.partial(_unsqueeze_kernel, f=f, cblk=cblk,
                                   H=H, W=W, Wf=Wf, fast=fast)
        blk_bytes = cblk * f * f * H * W * itemsize
        vmem_limit = int(min(_VMEM_CAP, max(32 << 20, 6 * blk_bytes)))
        y4 = pl.pallas_call(
            kernel,
            out_shape=jax.ShapeDtypeStruct((B, Co, H, f * Wf), x.dtype),
            grid=(B, Go),
            in_specs=[
                pl.BlockSpec((None, cblk, f * f * H, W), lambda b, g: (b, g, 0, 0)),
                pl.BlockSpec((f, W, Wf), lambda b, g: (0, 0, 0)),
            ],
            out_specs=pl.BlockSpec((None, cblk, H, f * Wf), lambda b, g: (b, g, 0, 0)),
            compiler_params=pltpu.CompilerParams(
                dimension_semantics=("parallel", "parallel"),
                vmem_limit_bytes=vmem_limit),
        )(xv, St)
        # metadata-only merge of (H, f) -> H*f
        return y4.reshape(B, Co, Hf, Wf)


# ------------------------------ pure-JAX reference --------------------------------
def _ref_squeeze(x, f):
    b, c, h, w = x.shape
    y = x.reshape(b, c, h // f, f, w // f, f)
    y = jnp.transpose(y, (0, 1, 3, 5, 2, 4))
    return y.reshape(b, c * f * f, h // f, w // f)


if __name__ == "__main__":
    key = jax.random.PRNGKey(0)
    x = jax.random.normal(key, (2, 4, 16, 16), dtype=jnp.float32)

    # forward (squeeze)
    y = squeeze_ts(x, factor=2, reverse=False)
    y = jax.block_until_ready(y)
    assert y.shape == (2, 16, 8, 8), y.shape
    assert jnp.allclose(y, _ref_squeeze(x, 2)), "squeeze mismatch vs reference"

    # forward (reverse=True, unsqueeze) -> must round-trip back to x
    x_rt = squeeze_ts(y, factor=2, reverse=True)
    x_rt = jax.block_until_ready(x_rt)
    assert x_rt.shape == x.shape, x_rt.shape
    assert jnp.allclose(x_rt, x), "unsqueeze round-trip mismatch"

    print("KERNEL_OK")
</pallas_src>

<mosaic_0001>
module attributes {stable_mosaic.version = 11 : i64} {
  func.func @_squeeze_kernel(%arg0: i32, %arg1: i32, %arg2: memref<1x1x32x32xf32, #tpu.memory_space<vmem>>, %arg3: memref<16x16xf32, #tpu.memory_space<vmem>>, %arg4: memref<1x4x2x2x8x8xf32, #tpu.memory_space<vmem>>) attributes {dimension_semantics = [#tpu.dimension_semantics<parallel>, #tpu.dimension_semantics<parallel>], iteration_bounds = array<i64: 2, 1>, scalar_prefetch = 0 : i64, scratch_operands = 0 : i64, tpu.core_type = #tpu.core_type<tc>, window_params = [{transform_indices = @transform_0, window_bounds = array<i64: 1, 1, 32, 32>}, {pipeline_mode = #tpu.pipeline_mode<synchronous>, transform_indices = @transform_1, window_bounds = array<i64: 16, 16>}, {transform_indices = @transform_2, window_bounds = array<i64: 1, 4, 2, 2, 8, 8>}]} {
    %c0 = arith.constant 0 : index
    %c0_0 = arith.constant 0 : index
    %0 = vector.load %arg3[%c0, %c0_0] : memref<16x16xf32, #tpu.memory_space<vmem>>, vector<16x16xf32>
    %c0_1 = arith.constant 0 : index
    %c0_2 = arith.constant 0 : index
    %c0_3 = arith.constant 0 : index
    %c0_4 = arith.constant 0 : index
    %1 = vector.load %arg2[%c0_1, %c0_2, %c0_3, %c0_4] : memref<1x1x32x32xf32, #tpu.memory_space<vmem>>, vector<1x1x32x16xf32>
    %2 = vector.shape_cast %1 : vector<1x1x32x16xf32> to vector<32x16xf32>
    %cst = arith.constant dense<0.000000e+00> : vector<32x16xf32>
    %3 = tpu.matmul %2, %0, %cst {dimension_numbers = #tpu.dot_dimension_numbers<[1], [0], [0], [1], [0, 0, 1, 1], [], []>, precision = #tpu.contract_precision<fp32>} : vector<32x16xf32>, vector<16x16xf32>, vector<32x16xf32> -> vector<32x16xf32>
    %4 = vector.extract_strided_slice %3 {offsets = [0, 0], sizes = [32, 8], strides = [1, 1]} : vector<32x16xf32> to vector<32x8xf32>
    %5 = vector.shape_cast %4 : vector<32x8xf32> to vector<4x8x8xf32>
    %c0_5 = arith.constant 0 : index
    %c0_6 = arith.constant 0 : index
    %c0_7 = arith.constant 0 : index
    %c0_8 = arith.constant 0 : index
    %c0_9 = arith.constant 0 : index
    %c0_10 = arith.constant 0 : index
    %6 = vector.load %arg4[%c0_5, %c0_6, %c0_7, %c0_8, %c0_9, %c0_10] : memref<1x4x2x2x8x8xf32, #tpu.memory_space<vmem>>, vector<1x4x1x1x8x8xf32>
    %7 = vector.shape_cast %6 : vector<1x4x1x1x8x8xf32> to vector<4x8x8xf32>
    %8 = vector.shape_cast %5 : vector<4x8x8xf32> to vector<1x4x1x1x8x8xf32>
    tpu.vector_store %arg4[%c0_5, %c0_6, %c0_7, %c0_8, %c0_9, %c0_10], %8 {strides = array<i32>} : memref<1x4x2x2x8x8xf32, #tpu.memory_space<vmem>>, vector<1x4x1x1x8x8xf32>,
    %9 = vector.extract_strided_slice %3 {offsets = [0, 8], sizes = [32, 8], strides = [1, 1]} : vector<32x16xf32> to vector<32x8xf32>
    %10 = vector.shape_cast %9 : vector<32x8xf32> to vector<4x8x8xf32>
    %c0_11 = arith.constant 0 : index
    %c0_12 = arith.constant 0 : index
    %c0_13 = arith.constant 0 : index
    %c1 = arith.constant 1 : index
    %c0_14 = arith.constant 0 : index
    %c0_15 = arith.constant 0 : index
    %11 = vector.load %arg4[%c0_11, %c0_12, %c0_13, %c1, %c0_14, %c0_15] : memref<1x4x2x2x8x8xf32, #tpu.memory_space<vmem>>, vector<1x4x1x1x8x8xf32>
    %12 = vector.shape_cast %11 : vector<1x4x1x1x8x8xf32> to vector<4x8x8xf32>
    %13 = vector.shape_cast %10 : vector<4x8x8xf32> to vector<1x4x1x1x8x8xf32>
    tpu.vector_store %arg4[%c0_11, %c0_12, %c0_13, %c1, %c0_14, %c0_15], %13 {strides = array<i32>} : memref<1x4x2x2x8x8xf32, #tpu.memory_space<vmem>>, vector<1x4x1x1x8x8xf32>,
    %c0_16 = arith.constant 0 : index
    %c0_17 = arith.constant 0 : index
    %c0_18 = arith.constant 0 : index
    %c16 = arith.constant 16 : index
    %14 = vector.load %arg2[%c0_16, %c0_17, %c0_18, %c16] : memref<1x1x32x32xf32, #tpu.memory_space<vmem>>, vector<1x1x32x16xf32>
    %15 = vector.shape_cast %14 : vector<1x1x32x16xf32> to vector<32x16xf32>
    %cst_19 = arith.constant dense<0.000000e+00> : vector<32x16xf32>
    %16 = tpu.matmul %15, %0, %cst_19 {dimension_numbers = #tpu.dot_dimension_numbers<[1], [0], [0], [1], [0, 0, 1, 1], [], []>, precision = #tpu.contract_precision<fp32>} : vector<32x16xf32>, vector<16x16xf32>, vector<32x16xf32> -> vector<32x16xf32>
    %17 = vector.extract_strided_slice %16 {offsets = [0, 0], sizes = [32, 8], strides = [1, 1]} : vector<32x16xf32> to vector<32x8xf32>
    %18 = vector.shape_cast %17 : vector<32x8xf32> to vector<4x8x8xf32>
    %c0_20 = arith.constant 0 : index
    %c0_21 = arith.constant 0 : index
    %c1_22 = arith.constant 1 : index
    %c0_23 = arith.constant 0 : index
    %c0_24 = arith.constant 0 : index
    %c0_25 = arith.constant 0 : index
    %19 = vector.load %arg4[%c0_20, %c0_21, %c1_22, %c0_23, %c0_24, %c0_25] : memref<1x4x2x2x8x8xf32, #tpu.memory_space<vmem>>, vector<1x4x1x1x8x8xf32>
    %20 = vector.shape_cast %19 : vector<1x4x1x1x8x8xf32> to vector<4x8x8xf32>
    %21 = vector.shape_cast %18 : vector<4x8x8xf32> to vector<1x4x1x1x8x8xf32>
    tpu.vector_store %arg4[%c0_20, %c0_21, %c1_22, %c0_23, %c0_24, %c0_25], %21 {strides = array<i32>} : memref<1x4x2x2x8x8xf32, #tpu.memory_space<vmem>>, vector<1x4x1x1x8x8xf32>,
    %22 = vector.extract_strided_slice %16 {offsets = [0, 8], sizes = [32, 8], strides = [1, 1]} : vector<32x16xf32> to vector<32x8xf32>
    %23 = vector.shape_cast %22 : vector<32x8xf32> to vector<4x8x8xf32>
    %c0_26 = arith.constant 0 : index
    %c0_27 = arith.constant 0 : index
    %c1_28 = arith.constant 1 : index
    %c1_29 = arith.constant 1 : index
    %c0_30 = arith.constant 0 : index
    %c0_31 = arith.constant 0 : index
    %24 = vector.load %arg4[%c0_26, %c0_27, %c1_28, %c1_29, %c0_30, %c0_31] : memref<1x4x2x2x8x8xf32, #tpu.memory_space<vmem>>, vector<1x4x1x1x8x8xf32>
    %25 = vector.shape_cast %24 : vector<1x4x1x1x8x8xf32> to vector<4x8x8xf32>
    %26 = vector.shape_cast %23 : vector<4x8x8xf32> to vector<1x4x1x1x8x8xf32>
    tpu.vector_store %arg4[%c0_26, %c0_27, %c1_28, %c1_29, %c0_30, %c0_31], %26 {strides = array<i32>} : memref<1x4x2x2x8x8xf32, #tpu.memory_space<vmem>>, vector<1x4x1x1x8x8xf32>,
    return
  }
  func.func @transform_0(%arg0: i32, %arg1: i32) -> (i32, i32, i32, i32) {
    %c0_i32 = arith.constant 0 : i32
    %c0_i32_0 = arith.constant 0 : i32
    %c0_i32_1 = arith.constant 0 : i32
    return %arg0, %arg1, %c0_i32, %c0_i32_0 : i32, i32, i32, i32
  }
  func.func @transform_1(%arg0: i32, %arg1: i32) -> (i32, i32) {
    %c0_i32 = arith.constant 0 : i32
    %c0_i32_0 = arith.constant 0 : i32
    %c0_i32_1 = arith.constant 0 : i32
    return %c0_i32, %c0_i32_0 : i32, i32
  }
  func.func @transform_2(%arg0: i32, %arg1: i32) -> (i32, i32, i32, i32, i32, i32) {
    %c0_i32 = arith.constant 0 : i32
    %c0_i32_0 = arith.constant 0 : i32
    %c0_i32_1 = arith.constant 0 : i32
    %c0_i32_2 = arith.constant 0 : i32
    %c0_i32_3 = arith.constant 0 : i32
    return %arg0, %arg1, %c0_i32, %c0_i32_0, %c0_i32_1, %c0_i32_2 : i32, i32, i32, i32, i32, i32
  }
}

</mosaic_0001>

<llo_original>
// kernel: tpu_custom_call.1
$region0: #{tpu_custom_call.1}
  #allocation0 [shape = 'u32[]', space=smem, size = 0x4, offset = 0x4, fixed_abs, tag = 'smem constant byte address 0x4 - core index']
  #allocation1 [shape = 'u32[144,128]{1,0:T(1,128)}', space=vmem, size = 0x12000, scoped, tag = 'internal scratch']
  %s0 = inlined_call_operand.hbm [shape: f32[2,1,32,32], index: 0, kind: input, shape index: {}]
  %s1 = inlined_call_operand.hbm [shape: f32[16,16], index: 1, kind: input, shape index: {}]
  %s2 = inlined_call_operand.hbm [shape: f32[2,4,2,2,8,8], index: 2, kind: output, shape index: {}]
  %s3 = sld [smem:[#allocation0]]
  $region49: #{tpu_custom_call.1} parent=0
    _
  %s5 = ssub.s32 1, %s3
  %s6 = scalar_select 0, %s5, %s3
  $region1: #{tpu_custom_call.1} parent=0
    #allocation2 [shape = 'u8[32768]{0}', space=vmem, size = 0x8000, scoped, tag = 'input window, operand 0']
    #allocation3 [shape = 's32[2]{0}', space=sflag, size = 0x8, scoped, tag = 'scoped memory for tpu_custom_call.1']
    #allocation4 [shape = 's32[2]{0}', space=sflag, size = 0x8, scoped, tag = 'scoped memory for tpu_custom_call.1']
    #allocation5 [shape = 'u8[8192]{0}', space=vmem, size = 0x2000, scoped, tag = 'input window, operand 1, single buffered']
    #allocation6 [shape = 's32[1]{0}', space=sflag, size = 0x4, scoped, tag = 'scoped memory for tpu_custom_call.1']
    #allocation7 [shape = 'u8[131072]{0}', space=vmem, size = 0x20000, scoped, tag = 'output window, operand 0']
    %7 = vsyncpa [#allocation3], 0
    %s8 = scalar_lea.sflag [#allocation3], 1
    %9 = vsyncpa %s8, 0
    %10 = vsyncpa [#allocation6], 0
    %11 = vsyncpa [#allocation4], 0
    %s12 = scalar_lea.sflag [#allocation4], 1
    %13 = vsyncpa %s12, 0
    loop: start=0, step=1, limit=4
    $region2: #{tpu_custom_call.1} parent=1 // loop_pre_header
      _
    $region3: #{tpu_custom_call.1} parent=1 // loop_header
      %s15 = sphi 0, %s19
      %p16 = scmp.ge.s32.totalorder %s15, 4
      %s22 = sphi 0, %s34
      %s23 = sphi 0, %s30
      %s24 = sphi 0, %s22
      %s25 = sphi 0, %s23
      %s26 = sphi 0, %s24
      %s27 = sphi 0, %s25
      %s39 = sphi 0, %s41
      %s42 = sphi 0, %s39
      %s43 = sphi 0, %s42
      %s59 = sphi 0, %s43
      %s63 = sphi 0, %s63
      %s65 = sphi 0, %s63
      %s66 = sphi 0, %s65
      %s80 = sphi 0, %s66
      %s88 = sphi 0, %s90
      %s91 = sphi 0, %s88
      %s92 = sphi 0, %s91
      %s108 = sphi 0, %s92
    $region4: #{tpu_custom_call.1} parent=1 // loop_header_branch
      %18 = sbr.rel (%p16) target = $region8
    $region5: #{tpu_custom_call.1} parent=1 // loop_body
      %s20 = ssub.s32 %s15, 1
      %s21 = ssub.s32 %s15, 2
      %s28 = sadd.s32 1, %s23
      %p29 = scmp.ge.s32.totalorder %s28, 1
      %s30 = scalar_select %p29, 0, %s28
      %s31 = sadd.s32 1, %s22
      %s32 = scalar_select %p29, %s31, %s22
      %p33 = scmp.ge.s32.totalorder %s32, 2
      %s34 = scalar_select %p33, 0, %s32
      %s35 = ssub.s32 %s22, %s34
      %s36 = ssub.s32 %s23, %s30
      %s37 = sor.u32 %s35, %s36
      %p38 = scmp.eq.s32.totalorder %s37, 0
      %s40 = sadd.s32 %s39, 1
      %s41 = scalar_select %p38, %s39, %s40
      %p44 = pneg %p38
      %p45 = scmp.eq.s32.totalorder %s15, 1
      %p46 = por %p44, %p45
      %p47 = scmp.ne.s32.totalorder %s39, %s42
      %p48 = scmp.eq.s32.totalorder %s15, 0
      %p49 = por %p47, %p48
      %p50 = scmp.ne.s32.totalorder %s39, %s42
      %p51 = scmp.eq.s32.totalorder %s20, 1
      %p52 = por %p50, %p51
      %p53 = scmp.ne.s32.totalorder %s42, %s43
      %p54 = scmp.eq.s32.totalorder %s20, 0
      %p55 = por %p53, %p54
      %p56 = scmp.ne.s32.totalorder %s42, %s43
      %p57 = scmp.eq.s32.totalorder %s21, 1
      %p58 = por %p56, %p57
      %p60 = scmp.ne.s32.totalorder %s43, %s59
      %p61 = scmp.eq.s32.totalorder %s21, 0
      %p62 = por %p60, %p61
      %s64 = sadd.s32 %s63, 1
      %p67 = scmp.eq.s32.totalorder %s15, 1
      %p68 = scmp.ne.s32.totalorder %s63, %s65
      %p69 = scmp.eq.s32.totalorder %s15, 0
      %p70 = por %p68, %p69
      %p71 = scmp.ne.s32.totalorder %s63, %s65
      %p72 = scmp.eq.s32.totalorder %s20, 1
      %p73 = por %p71, %p72
      %p74 = scmp.ne.s32.totalorder %s65, %s66
      %p75 = scmp.eq.s32.totalorder %s20, 0
      %p76 = por %p74, %p75
      %p77 = scmp.ne.s32.totalorder %s65, %s66
      %p78 = scmp.eq.s32.totalorder %s21, 1
      %p79 = por %p77, %p78
      %p81 = scmp.ne.s32.totalorder %s66, %s80
      %p82 = scmp.eq.s32.totalorder %s21, 0
      %p83 = por %p81, %p82
      %s84 = ssub.s32 %s22, %s34
      %s85 = ssub.s32 %s23, %s30
      %s86 = sor.u32 %s84, %s85
      %p87 = scmp.eq.s32.totalorder %s86, 0
      %s89 = sadd.s32 %s88, 1
      %s90 = scalar_select %p87, %s88, %s89
      %p93 = pneg %p87
      %p94 = scmp.eq.s32.totalorder %s15, 1
      %p95 = por %p93, %p94
      %p96 = scmp.ne.s32.totalorder %s88, %s91
      %p97 = scmp.eq.s32.totalorder %s15, 0
      %p98 = por %p96, %p97
      %p99 = scmp.ne.s32.totalorder %s88, %s91
      %p100 = scmp.eq.s32.totalorder %s20, 1
      %p101 = por %p99, %p100
      %p102 = scmp.ne.s32.totalorder %s91, %s92
      %p103 = scmp.eq.s32.totalorder %s20, 0
      %p104 = por %p102, %p103
      %p105 = scmp.ne.s32.totalorder %s91, %s92
      %p106 = scmp.eq.s32.totalorder %s21, 1
      %p107 = por %p105, %p106
      %p109 = scmp.ne.s32.totalorder %s92, %s108
      %p110 = scmp.eq.s32.totalorder %s21, 0
      %p111 = por %p109, %p110
      %p112 = scmp.le.s32.totalorder 1, %s15
      %p113 = scmp.lt.s32.totalorder %s15, 3
      %p114 = pnand %p112, %p113
      %p115 = pneg %p114
      // Predicated region
      $region9: #{tpu_custom_call.1} parent=5 // pred_check
        _
      $region10: #{tpu_custom_call.1} parent=5 // pred_check_branch
        %117 = sbr.rel (%p114) target = $region12
      $region11: #{tpu_custom_call.1} parent=5 // pred_region
        %s118 = ssub.s32 %s15, 1
        // Predicated region
        $region13: #{tpu_custom_call.1} parent=11 // pred_check
          %p119 = pneg %p76
        $region14: #{tpu_custom_call.1} parent=11 // pred_check_branch
          %121 = sbr.rel (%p119) target = $region16
        $region15: #{tpu_custom_call.1} parent=11 // pred_region
          %s123 = ssub.s32 256, 256
          %124 = vsyncadd [#allocation6], %s123
          %s125 = sshll.u32 [#allocation5], 4
          %s126 = int_to_ptr.vmem [resolvable:$true] %s125
          %131 = dma.hbm_to_vmem [thread:$0]  %s1, 256, %s126, [#allocation6], 128, 128, 8
        $region16: #{tpu_custom_call.1} parent=11 // pred_fallthru
          _
      $region12: #{tpu_custom_call.1} parent=5 // pred_fallthru
        _
      %p132 = scmp.lt.s32.totalorder %s15, 2
      // Predicated region
      $region17: #{tpu_custom_call.1} parent=5 // pred_check
        %p133 = pneg %p132
      $region18: #{tpu_custom_call.1} parent=5 // pred_check_branch
        %135 = sbr.rel (%p133) target = $region20
      $region19: #{tpu_custom_call.1} parent=5 // pred_region
        // Predicated region
        $region21: #{tpu_custom_call.1} parent=19 // pred_check
          %p136 = pneg %p49
        $region22: #{tpu_custom_call.1} parent=19 // pred_check_branch
          %138 = sbr.rel (%p136) target = $region24
        $region23: #{tpu_custom_call.1} parent=19 // pred_region
          %s139 = sand.u32 %s39, 1
          %s140 = scalar_lea.sflag [#allocation3], %s139
          %s141 = sand.u32 %s39, 1
          %s142 = smul.addr %s141, 32
          %s143 = scalar_lea.vmem [#allocation2], %s142
          %s145 = ssub.s32 512, 512
          %146 = vsyncadd %s140, %s145
          %s147 = smul.addr %s23, 4
          %s148 = smul.addr %s22, 4
          %s149 = sadd.s32 %s147, %s148
          %s150 = smul.addr %s149, 128
          %s151 = scalar_lea.hbm %s0, %s150
          %s152 = sshll.u32 %s143, 4
          %s153 = int_to_ptr.vmem [resolvable:$true] %s152
          %158 = dma.hbm_to_vmem [thread:$0]  %s151, 512, %s153, %s140, 128, 128, 8
        $region24: #{tpu_custom_call.1} parent=19 // pred_fallthru
          _
      $region20: #{tpu_custom_call.1} parent=5 // pred_fallthru
        _
      %p159 = scmp.le.s32.totalorder 1, %s15
      %p160 = scmp.lt.s32.totalorder %s15, 3
      %p161 = pnand %p159, %p160
      %p162 = pneg %p161
      // Predicated region
      $region25: #{tpu_custom_call.1} parent=5 // pred_check
        _
      $region26: #{tpu_custom_call.1} parent=5 // pred_check_branch
        %164 = sbr.rel (%p161) target = $region28
      $region27: #{tpu_custom_call.1} parent=5 // pred_region
        %s165 = ssub.s32 %s15, 1
        %s166 = sand.u32 %s42, 1
        %s167 = scalar_lea.sflag [#allocation3], %s166
        %s168 = sand.u32 %s42, 1
        %s169 = smul.addr %s168, 32
        %s170 = scalar_lea.vmem [#allocation2], %s169
        // Predicated region
        $region29: #{tpu_custom_call.1} parent=27 // pred_check
          %p171 = pneg %p55
        $region30: #{tpu_custom_call.1} parent=27 // pred_check_branch
          %173 = sbr.rel (%p171) target = $region32
        $region31: #{tpu_custom_call.1} parent=27 // pred_region
          %174 = dma.done %s167, 512
        $region32: #{tpu_custom_call.1} parent=27 // pred_fallthru
          _
        // Predicated region
        $region33: #{tpu_custom_call.1} parent=27 // pred_check
          %p175 = pneg %p76
        $region34: #{tpu_custom_call.1} parent=27 // pred_check_branch
          %177 = sbr.rel (%p175) target = $region36
        $region35: #{tpu_custom_call.1} parent=27 // pred_region
          %178 = dma.done [#allocation6], 256
        $region36: #{tpu_custom_call.1} parent=27 // pred_fallthru
          _
        %s179 = sand.u32 %s42, 1
        %s180 = scalar_lea.sflag [#allocation3], %s179
        %s181 = sand.u32 %s42, 1
        %s182 = smul.addr %s181, 32
        %s183 = scalar_lea.vmem [#allocation2], %s182
        %p184 = pneg %p55
        %p185 = pneg %p52
        %p186 = pneg %p76
        %p187 = pneg %p73
        %p188 = pneg %p104
        %p189 = pneg %p101
        %s190 = sand.u32 %s91, 1
        %s191 = scalar_lea.sflag [#allocation4], %s190
        %s192 = sand.u32 %s91, 1
        %s193 = smul.addr %s192, 128
        %s194 = scalar_lea.vmem [#allocation7], %s193
        %s195 = smul.u32 4, %s25
        %v196 = vld [vmem:[#allocation5] sm:$0xff]
        %v197 = vld [vmem:[#allocation5 + $0x8] sm:$0xff]
        %v198 = vld [vmem:[%s170] sm:$0xff]
        %v199 = vld [vmem:[%s170 + $0x8] sm:$0xff]
        %v200 = vld [vmem:[%s170 + $0x10] sm:$0xff]
        %v201 = vld [vmem:[%s170 + $0x18] sm:$0xff]
        %vm202 = vcmask 130048
        %v204 = vsel %vm202, %v198, 0
        %v207 = vsel %vm202, %v199, 0
        %v210 = vsel %vm202, %v200, 0
        %v213 = vsel %vm202, %v201, 0
        %215 = vmatprep.subr.mxu0 0.0
        %216 = vmatpush1.msra.mxu0 0.0
        %217 = vmatprep.subr.mxu0 0.0
        %218 = vmatpush1.msra.mxu0 0.0
        %219 = vmatprep.subr.mxu0 0.0
        %220 = vmatpush1.msra.mxu0 0.0
        %221 = vmatprep.subr.mxu0 0.0
        %222 = vmatpush1.msra.mxu0 0.0
        %223 = vmatprep.subr.mxu0 0.0
        %224 = vmatpush1.msra.mxu0 0.0
        %225 = vmatprep.subr.mxu0 0.0
        %226 = vmatpush1.msra.mxu0 0.0
        %227 = vmatprep.subr.mxu0 0.0
        %228 = vmatpush1.msra.mxu0 0.0
        %229 = vmatprep.subr.mxu0 0.0
        %230 = vmatpush1.msra.mxu0 0.0
        %231 = vmatprep.subr.mxu0 0.0
        %232 = vmatpush1.msra.mxu0 0.0
        %233 = vmatprep.subr.mxu0 0.0
        %234 = vmatpush1.msra.mxu0 0.0
        %235 = vmatprep.subr.mxu0 0.0
        %236 = vmatpush1.msra.mxu0 0.0
        %237 = vmatprep.subr.mxu0 0.0
        %238 = vmatpush1.msra.mxu0 0.0
        %239 = vmatprep.subr.mxu0 0.0
        %240 = vmatpush1.msra.mxu0 0.0
        %241 = vmatprep.subr.mxu0 0.0
        %242 = vmatpush1.msra.mxu0 0.0
        %243 = vmatprep.subr.mxu0 0.0
        %v244 = vand.u32 %v197, 4294901760
        %245 = vmatpush1.msra.mxu0 %v244
        %246 = vmatprep.subr.mxu0 0.0
        %v247 = vand.u32 %v196, 4294901760
        %248 = vmatpush1.msra.mxu0 %v247
        %249 = vmatprep.subr.mxu0 0.0
        %250 = vmatpush2.msra.mxu0 0.0
        %251 = vmatprep.subr.mxu0 0.0
        %252 = vmatpush2.msra.mxu0 0.0
        %253 = vmatprep.subr.mxu0 0.0
        %254 = vmatpush2.msra.mxu0 0.0
        %255 = vmatprep.subr.mxu0 0.0
        %256 = vmatpush2.msra.mxu0 0.0
        %257 = vmatprep.subr.mxu0 0.0
        %258 = vmatpush2.msra.mxu0 0.0
        %259 = vmatprep.subr.mxu0 0.0
        %260 = vmatpush2.msra.mxu0 0.0
        %261 = vmatprep.subr.mxu0 0.0
        %262 = vmatpush2.msra.mxu0 0.0
        %263 = vmatprep.subr.mxu0 0.0
        %264 = vmatpush2.msra.mxu0 0.0
        %265 = vmatprep.subr.mxu0 0.0
        %266 = vmatpush2.msra.mxu0 0.0
        %267 = vmatprep.subr.mxu0 0.0
        %268 = vmatpush2.msra.mxu0 0.0
        %269 = vmatprep.subr.mxu0 0.0
        %270 = vmatpush2.msra.mxu0 0.0
        %271 = vmatprep.subr.mxu0 0.0
        %272 = vmatpush2.msra.mxu0 0.0
        %273 = vmatprep.subr.mxu0 0.0
        %274 = vmatpush2.msra.mxu0 0.0
        %275 = vmatprep.subr.mxu0 0.0
        %276 = vmatpush2.msra.mxu0 0.0
        %277 = vmatprep.subr.mxu0 0.0
        %278 = vmatpush2.msra.mxu0 0.0
        %279 = vmatprep.subr.mxu0 0.0
        %280 = vmatpush2.msra.mxu0 0.0
        %281 = vmatprep.mubr.f32.mxu0 0.0
        %v282 = vand.u32 %v204, 4294901760
        %v283 = vsub.f32 %v204, %v282
        %v284 = vand.u32 %v283, 4294901760
        %v285 = vsub.f32 %v283, %v284
        %v286 = vand.u32 %v285, 4294901760
        %287 = vmatmul.mubr.f32.gmra.mxu0 %v286
        %v288 = vpop.f32.mrf.mxu0
        %v289 = vadd.f32 0.0, %v288
        %v290 = vpop.f32.mrf.mxu0
        %291 = vmatprep.mubr.f32.mxu0 0.0
        %v292 = vand.u32 %v207, 4294901760
        %v293 = vsub.f32 %v207, %v292
        %v294 = vand.u32 %v293, 4294901760
        %v295 = vsub.f32 %v293, %v294
        %v296 = vand.u32 %v295, 4294901760
        %297 = vmatmul.mubr.f32.gmra.mxu0 %v296
        %v298 = vpop.f32.mrf.mxu0
        %v299 = vadd.f32 0.0, %v298
        %v300 = vpop.f32.mrf.mxu0
        %301 = vmatprep.mubr.f32.mxu0 0.0
        %v302 = vand.u32 %v210, 4294901760
        %v303 = vsub.f32 %v210, %v302
        %v304 = vand.u32 %v303, 4294901760
        %v305 = vsub.f32 %v303, %v304
        %v306 = vand.u32 %v305, 4294901760
        %307 = vmatmul.mubr.f32.gmra.mxu0 %v306
        %v308 = vpop.f32.mrf.mxu0
        %v309 = vadd.f32 0.0, %v308
        %v310 = vpop.f32.mrf.mxu0
        %311 = vmatprep.mubr.f32.mxu0 0.0
        %v312 = vand.u32 %v213, 4294901760
        %v313 = vsub.f32 %v213, %v312
        %v314 = vand.u32 %v313, 4294901760
        %v315 = vsub.f32 %v313, %v314
        %v316 = vand.u32 %v315, 4294901760
        %317 = vmatmul.mubr.f32.gmra.mxu0 %v316
        %v318 = vpop.f32.mrf.mxu0
        %v319 = vadd.f32 0.0, %v318
        %v320 = vpop.f32.mrf.mxu0
        %321 = vdwg.mxu0
        %322 = vmatprep.subr.mxu0 0.0
        %323 = vmatpush1.msra.mxu0 0.0
        %324 = vmatprep.subr.mxu0 0.0
        %325 = vmatpush1.msra.mxu0 0.0
        %326 = vmatprep.subr.mxu0 0.0
        %327 = vmatpush1.msra.mxu0 0.0
        %328 = vmatprep.subr.mxu0 0.0
        %329 = vmatpush1.msra.mxu0 0.0
        %330 = vmatprep.subr.mxu0 0.0
        %331 = vmatpush1.msra.mxu0 0.0
        %332 = vmatprep.subr.mxu0 0.0
        %333 = vmatpush1.msra.mxu0 0.0
        %334 = vmatprep.subr.mxu0 0.0
        %335 = vmatpush1.msra.mxu0 0.0
        %336 = vmatprep.subr.mxu0 0.0
        %337 = vmatpush1.msra.mxu0 0.0
        %338 = vmatprep.subr.mxu0 0.0
        %339 = vmatpush1.msra.mxu0 0.0
        %340 = vmatprep.subr.mxu0 0.0
        %341 = vmatpush1.msra.mxu0 0.0
        %342 = vmatprep.subr.mxu0 0.0
        %343 = vmatpush1.msra.mxu0 0.0
        %344 = vmatprep.subr.mxu0 0.0
        %345 = vmatpush1.msra.mxu0 0.0
        %346 = vmatprep.subr.mxu0 0.0
        %347 = vmatpush1.msra.mxu0 0.0
        %348 = vmatprep.subr.mxu0 0.0
        %349 = vmatpush1.msra.mxu0 0.0
        %350 = vmatprep.subr.mxu0 0.0
        %v351 = vand.u32 %v197, 4294901760
        %v352 = vsub.f32 %v197, %v351
        %v353 = vand.u32 %v352, 4294901760
        %v354 = vsub.f32 %v352, %v353
        %v355 = vand.u32 %v354, 4294901760
        %356 = vmatpush1.msra.mxu0 %v355
        %357 = vmatprep.subr.mxu0 0.0
        %v358 = vand.u32 %v196, 4294901760
        %v359 = vsub.f32 %v196, %v358
        %v360 = vand.u32 %v359, 4294901760
        %v361 = vsub.f32 %v359, %v360
        %v362 = vand.u32 %v361, 4294901760
        %363 = vmatpush1.msra.mxu0 %v362
        %364 = vmatprep.subr.mxu0 0.0
        %365 = vmatpush2.msra.mxu0 0.0
        %366 = vmatprep.subr.mxu0 0.0
        %367 = vmatpush2.msra.mxu0 0.0
        %368 = vmatprep.subr.mxu0 0.0
        %369 = vmatpush2.msra.mxu0 0.0
        %370 = vmatprep.subr.mxu0 0.0
        %371 = vmatpush2.msra.mxu0 0.0
        %372 = vmatprep.subr.mxu0 0.0
        %373 = vmatpush2.msra.mxu0 0.0
        %374 = vmatprep.subr.mxu0 0.0
        %375 = vmatpush2.msra.mxu0 0.0
        %376 = vmatprep.subr.mxu0 0.0
        %377 = vmatpush2.msra.mxu0 0.0
        %378 = vmatprep.subr.mxu0 0.0
        %379 = vmatpush2.msra.mxu0 0.0
        %380 = vmatprep.subr.mxu0 0.0
        %381 = vmatpush2.msra.mxu0 0.0
        %382 = vmatprep.subr.mxu0 0.0
        %383 = vmatpush2.msra.mxu0 0.0
        %384 = vmatprep.subr.mxu0 0.0
        %385 = vmatpush2.msra.mxu0 0.0
        %386 = vmatprep.subr.mxu0 0.0
        %387 = vmatpush2.msra.mxu0 0.0
        %388 = vmatprep.subr.mxu0 0.0
        %389 = vmatpush2.msra.mxu0 0.0
        %390 = vmatprep.subr.mxu0 0.0
        %391 = vmatpush2.msra.mxu0 0.0
        %392 = vmatprep.subr.mxu0 0.0
        %393 = vmatpush2.msra.mxu0 0.0
        %394 = vmatprep.subr.mxu0 0.0
        %395 = vmatpush2.msra.mxu0 0.0
        %396 = vmatprep.mubr.f32.mxu0 0.0
        %v397 = vand.u32 %v204, 4294901760
        %398 = vmatmul.mubr.f32.gmra.mxu0 %v397
        %v399 = vpop.f32.mrf.mxu0
        %v400 = vadd.f32 %v289, %v399
        %v401 = vpop.f32.mrf.mxu0
        %402 = vmatprep.mubr.f32.mxu0 0.0
        %v403 = vand.u32 %v207, 4294901760
        %404 = vmatmul.mubr.f32.gmra.mxu0 %v403
        %v405 = vpop.f32.mrf.mxu0
        %v406 = vadd.f32 %v299, %v405
        %v407 = vpop.f32.mrf.mxu0
        %408 = vmatprep.mubr.f32.mxu0 0.0
        %v409 = vand.u32 %v210, 4294901760
        %410 = vmatmul.mubr.f32.gmra.mxu0 %v409
        %v411 = vpop.f32.mrf.mxu0
        %v412 = vadd.f32 %v309, %v411
        %v413 = vpop.f32.mrf.mxu0
        %414 = vmatprep.mubr.f32.mxu0 0.0
        %v415 = vand.u32 %v213, 4294901760
        %416 = vmatmul.mubr.f32.gmra.mxu0 %v415
        %v417 = vpop.f32.mrf.mxu0
        %v418 = vadd.f32 %v319, %v417
        %v419 = vpop.f32.mrf.mxu0
        %420 = vdwg.mxu0
        %421 = vmatprep.subr.mxu0 0.0
        %422 = vmatpush1.msra.mxu0 0.0
        %423 = vmatprep.subr.mxu0 0.0
        %424 = vmatpush1.msra.mxu0 0.0
        %425 = vmatprep.subr.mxu0 0.0
        %426 = vmatpush1.msra.mxu0 0.0
        %427 = vmatprep.subr.mxu0 0.0
        %428 = vmatpush1.msra.mxu0 0.0
        %429 = vmatprep.subr.mxu0 0.0
        %430 = vmatpush1.msra.mxu0 0.0
        %431 = vmatprep.subr.mxu0 0.0
        %432 = vmatpush1.msra.mxu0 0.0
        %433 = vmatprep.subr.mxu0 0.0
        %434 = vmatpush1.msra.mxu0 0.0
        %435 = vmatprep.subr.mxu0 0.0
        %436 = vmatpush1.msra.mxu0 0.0
        %437 = vmatprep.subr.mxu0 0.0
        %438 = vmatpush1.msra.mxu0 0.0
        %439 = vmatprep.subr.mxu0 0.0
        %440 = vmatpush1.msra.mxu0 0.0
        %441 = vmatprep.subr.mxu0 0.0
        %442 = vmatpush1.msra.mxu0 0.0
        %443 = vmatprep.subr.mxu0 0.0
        %444 = vmatpush1.msra.mxu0 0.0
        %445 = vmatprep.subr.mxu0 0.0
        %446 = vmatpush1.msra.mxu0 0.0
        %447 = vmatprep.subr.mxu0 0.0
        %448 = vmatpush1.msra.mxu0 0.0
        %449 = vmatprep.subr.mxu0 0.0
        %v450 = vand.u32 %v197, 4294901760
        %v451 = vsub.f32 %v197, %v450
        %452 = vmatpush1.msra.mxu0 %v451
        %453 = vmatprep.subr.mxu0 0.0
        %v454 = vand.u32 %v196, 4294901760
        %v455 = vsub.f32 %v196, %v454
        %456 = vmatpush1.msra.mxu0 %v455
        %457 = vmatprep.subr.mxu0 0.0
        %458 = vmatpush2.msra.mxu0 0.0
        %459 = vmatprep.subr.mxu0 0.0
        %460 = vmatpush2.msra.mxu0 0.0
        %461 = vmatprep.subr.mxu0 0.0
        %462 = vmatpush2.msra.mxu0 0.0
        %463 = vmatprep.subr.mxu0 0.0
        %464 = vmatpush2.msra.mxu0 0.0
        %465 = vmatprep.subr.mxu0 0.0
        %466 = vmatpush2.msra.mxu0 0.0
        %467 = vmatprep.subr.mxu0 0.0
        %468 = vmatpush2.msra.mxu0 0.0
        %469 = vmatprep.subr.mxu0 0.0
        %470 = vmatpush2.msra.mxu0 0.0
        %471 = vmatprep.subr.mxu0 0.0
        %472 = vmatpush2.msra.mxu0 0.0
        %473 = vmatprep.subr.mxu0 0.0
        %474 = vmatpush2.msra.mxu0 0.0
        %475 = vmatprep.subr.mxu0 0.0
        %476 = vmatpush2.msra.mxu0 0.0
        %477 = vmatprep.subr.mxu0 0.0
        %478 = vmatpush2.msra.mxu0 0.0
        %479 = vmatprep.subr.mxu0 0.0
        %480 = vmatpush2.msra.mxu0 0.0
        %481 = vmatprep.subr.mxu0 0.0
        %482 = vmatpush2.msra.mxu0 0.0
        %483 = vmatprep.subr.mxu0 0.0
        %484 = vmatpush2.msra.mxu0 0.0
        %485 = vmatprep.subr.mxu0 0.0
        %486 = vmatpush2.msra.mxu0 0.0
        %487 = vmatprep.subr.mxu0 0.0
        %488 = vmatpush2.msra.mxu0 0.0
        %489 = vmatprep.mubr.f32.mxu0 0.0
        %v490 = vand.u32 %v204, 4294901760
        %v491 = vsub.f32 %v204, %v490
        %492 = vmatmul.mubr.f32.gmra.mxu0 %v491
        %v493 = vpop.f32.mrf.mxu0
        %v494 = vadd.f32 %v400, %v493
        %v495 = vpop.f32.mrf.mxu0
        %496 = vmatprep.mubr.f32.mxu0 0.0
        %v497 = vand.u32 %v207, 4294901760
        %v498 = vsub.f32 %v207, %v497
        %499 = vmatmul.mubr.f32.gmra.mxu0 %v498
        %v500 = vpop.f32.mrf.mxu0
        %v501 = vadd.f32 %v406, %v500
        %v502 = vpop.f32.mrf.mxu0
        %503 = vmatprep.mubr.f32.mxu0 0.0
        %v504 = vand.u32 %v210, 4294901760
        %v505 = vsub.f32 %v210, %v504
        %506 = vmatmul.mubr.f32.gmra.mxu0 %v505
        %v507 = vpop.f32.mrf.mxu0
        %v508 = vadd.f32 %v412, %v507
        %v509 = vpop.f32.mrf.mxu0
        %510 = vmatprep.mubr.f32.mxu0 0.0
        %v511 = vand.u32 %v213, 4294901760
        %v512 = vsub.f32 %v213, %v511
        %513 = vmatmul.mubr.f32.gmra.mxu0 %v512
        %v514 = vpop.f32.mrf.mxu0
        %v515 = vadd.f32 %v418, %v514
        %v516 = vpop.f32.mrf.mxu0
        %517 = vdwg.mxu0
        %518 = vmatprep.subr.mxu0 0.0
        %519 = vmatpush1.msra.mxu0 0.0
        %520 = vmatprep.subr.mxu0 0.0
        %521 = vmatpush1.msra.mxu0 0.0
        %522 = vmatprep.subr.mxu0 0.0
        %523 = vmatpush1.msra.mxu0 0.0
        %524 = vmatprep.subr.mxu0 0.0
        %525 = vmatpush1.msra.mxu0 0.0
        %526 = vmatprep.subr.mxu0 0.0
        %527 = vmatpush1.msra.mxu0 0.0
        %528 = vmatprep.subr.mxu0 0.0
        %529 = vmatpush1.msra.mxu0 0.0
        %530 = vmatprep.subr.mxu0 0.0
        %531 = vmatpush1.msra.mxu0 0.0
        %532 = vmatprep.subr.mxu0 0.0
        %533 = vmatpush1.msra.mxu0 0.0
        %534 = vmatprep.subr.mxu0 0.0
        %535 = vmatpush1.msra.mxu0 0.0
        %536 = vmatprep.subr.mxu0 0.0
        %537 = vmatpush1.msra.mxu0 0.0
        %538 = vmatprep.subr.mxu0 0.0
        %539 = vmatpush1.msra.mxu0 0.0
        %540 = vmatprep.subr.mxu0 0.0
        %541 = vmatpush1.msra.mxu0 0.0
        %542 = vmatprep.subr.mxu0 0.0
        %543 = vmatpush1.msra.mxu0 0.0
        %544 = vmatprep.subr.mxu0 0.0
        %545 = vmatpush1.msra.mxu0 0.0
        %546 = vmatprep.subr.mxu0 0.0
        %v547 = vand.u32 %v197, 4294901760
        %548 = vmatpush1.msra.mxu0 %v547
        %549 = vmatprep.subr.mxu0 0.0
        %v550 = vand.u32 %v196, 4294901760
        %551 = vmatpush1.msra.mxu0 %v550
        %552 = vmatprep.subr.mxu0 0.0
        %553 = vmatpush2.msra.mxu0 0.0
        %554 = vmatprep.subr.mxu0 0.0
        %555 = vmatpush2.msra.mxu0 0.0
        %556 = vmatprep.subr.mxu0 0.0
        %557 = vmatpush2.msra.mxu0 0.0
        %558 = vmatprep.subr.mxu0 0.0
        %559 = vmatpush2.msra.mxu0 0.0
        %560 = vmatprep.subr.mxu0 0.0
        %561 = vmatpush2.msra.mxu0 0.0
        %562 = vmatprep.subr.mxu0 0.0
        %563 = vmatpush2.msra.mxu0 0.0
        %564 = vmatprep.subr.mxu0 0.0
        %565 = vmatpush2.msra.mxu0 0.0
        %566 = vmatprep.subr.mxu0 0.0
        %567 = vmatpush2.msra.mxu0 0.0
        %568 = vmatprep.subr.mxu0 0.0
        %569 = vmatpush2.msra.mxu0 0.0
        %570 = vmatprep.subr.mxu0 0.0
        %571 = vmatpush2.msra.mxu0 0.0
        %572 = vmatprep.subr.mxu0 0.0
        %573 = vmatpush2.msra.mxu0 0.0
        %574 = vmatprep.subr.mxu0 0.0
        %575 = vmatpush2.msra.mxu0 0.0
        %576 = vmatprep.subr.mxu0 0.0
        %577 = vmatpush2.msra.mxu0 0.0
        %578 = vmatprep.subr.mxu0 0.0
        %579 = vmatpush2.msra.mxu0 0.0
        %580 = vmatprep.subr.mxu0 0.0
        %581 = vmatpush2.msra.mxu0 0.0
        %582 = vmatprep.subr.mxu0 0.0
        %583 = vmatpush2.msra.mxu0 0.0
        %584 = vmatprep.mubr.f32.mxu0 0.0
        %v585 = vand.u32 %v204, 4294901760
        %v586 = vsub.f32 %v204, %v585
        %v587 = vand.u32 %v586, 4294901760
        %588 = vmatmul.mubr.f32.gmra.mxu0 %v587
        %v589 = vpop.f32.mrf.mxu0
        %v590 = vadd.f32 %v494, %v589
        %v591 = vpop.f32.mrf.mxu0
        %592 = vmatprep.mubr.f32.mxu0 0.0
        %v593 = vand.u32 %v207, 4294901760
        %v594 = vsub.f32 %v207, %v593
        %v595 = vand.u32 %v594, 4294901760
        %596 = vmatmul.mubr.f32.gmra.mxu0 %v595
        %v597 = vpop.f32.mrf.mxu0
        %v598 = vadd.f32 %v501, %v597
        %v599 = vpop.f32.mrf.mxu0
        %600 = vmatprep.mubr.f32.mxu0 0.0
        %v601 = vand.u32 %v210, 4294901760
        %v602 = vsub.f32 %v210, %v601
        %v603 = vand.u32 %v602, 4294901760
        %604 = vmatmul.mubr.f32.gmra.mxu0 %v603
        %v605 = vpop.f32.mrf.mxu0
        %v606 = vadd.f32 %v508, %v605
        %v607 = vpop.f32.mrf.mxu0
        %608 = vmatprep.mubr.f32.mxu0 0.0
        %v609 = vand.u32 %v213, 4294901760
        %v610 = vsub.f32 %v213, %v609
        %v611 = vand.u32 %v610, 4294901760
        %612 = vmatmul.mubr.f32.gmra.mxu0 %v611
        %v613 = vpop.f32.mrf.mxu0
        %v614 = vadd.f32 %v515, %v613
        %v615 = vpop.f32.mrf.mxu0
        %616 = vdwg.mxu0
        %617 = vmatprep.subr.mxu0 0.0
        %618 = vmatpush1.msra.mxu0 0.0
        %619 = vmatprep.subr.mxu0 0.0
        %620 = vmatpush1.msra.mxu0 0.0
        %621 = vmatprep.subr.mxu0 0.0
        %622 = vmatpush1.msra.mxu0 0.0
        %623 = vmatprep.subr.mxu0 0.0
        %624 = vmatpush1.msra.mxu0 0.0
        %625 = vmatprep.subr.mxu0 0.0
        %626 = vmatpush1.msra.mxu0 0.0
        %627 = vmatprep.subr.mxu0 0.0
        %628 = vmatpush1.msra.mxu0 0.0
        %629 = vmatprep.subr.mxu0 0.0
        %630 = vmatpush1.msra.mxu0 0.0
        %631 = vmatprep.subr.mxu0 0.0
        %632 = vmatpush1.msra.mxu0 0.0
        %633 = vmatprep.subr.mxu0 0.0
        %634 = vmatpush1.msra.mxu0 0.0
        %635 = vmatprep.subr.mxu0 0.0
        %636 = vmatpush1.msra.mxu0 0.0
        %637 = vmatprep.subr.mxu0 0.0
        %638 = vmatpush1.msra.mxu0 0.0
        %639 = vmatprep.subr.mxu0 0.0
        %640 = vmatpush1.msra.mxu0 0.0
        %641 = vmatprep.subr.mxu0 0.0
        %642 = vmatpush1.msra.mxu0 0.0
        %643 = vmatprep.subr.mxu0 0.0
        %644 = vmatpush1.msra.mxu0 0.0
        %645 = vmatprep.subr.mxu0 0.0
        %v646 = vand.u32 %v197, 4294901760
        %v647 = vsub.f32 %v197, %v646
        %v648 = vand.u32 %v647, 4294901760
        %649 = vmatpush1.msra.mxu0 %v648
        %650 = vmatprep.subr.mxu0 0.0
        %v651 = vand.u32 %v196, 4294901760
        %v652 = vsub.f32 %v196, %v651
        %v653 = vand.u32 %v652, 4294901760
        %654 = vmatpush1.msra.mxu0 %v653
        %655 = vmatprep.subr.mxu0 0.0
        %656 = vmatpush2.msra.mxu0 0.0
        %657 = vmatprep.subr.mxu0 0.0
        %658 = vmatpush2.msra.mxu0 0.0
        %659 = vmatprep.subr.mxu0 0.0
        %660 = vmatpush2.msra.mxu0 0.0
        %661 = vmatprep.subr.mxu0 0.0
        %662 = vmatpush2.msra.mxu0 0.0
        %663 = vmatprep.subr.mxu0 0.0
        %664 = vmatpush2.msra.mxu0 0.0
        %665 = vmatprep.subr.mxu0 0.0
        %666 = vmatpush2.msra.mxu0 0.0
        %667 = vmatprep.subr.mxu0 0.0
        %668 = vmatpush2.msra.mxu0 0.0
        %669 = vmatprep.subr.mxu0 0.0
        %670 = vmatpush2.msra.mxu0 0.0
        %671 = vmatprep.subr.mxu0 0.0
        %672 = vmatpush2.msra.mxu0 0.0
        %673 = vmatprep.subr.mxu0 0.0
        %674 = vmatpush2.msra.mxu0 0.0
        %675 = vmatprep.subr.mxu0 0.0
        %676 = vmatpush2.msra.mxu0 0.0
        %677 = vmatprep.subr.mxu0 0.0
        %678 = vmatpush2.msra.mxu0 0.0
        %679 = vmatprep.subr.mxu0 0.0
        %680 = vmatpush2.msra.mxu0 0.0
        %681 = vmatprep.subr.mxu0 0.0
        %682 = vmatpush2.msra.mxu0 0.0
        %683 = vmatprep.subr.mxu0 0.0
        %684 = vmatpush2.msra.mxu0 0.0
        %685 = vmatprep.subr.mxu0 0.0
        %686 = vmatpush2.msra.mxu0 0.0
        %687 = vmatprep.mubr.f32.mxu0 0.0
        %v688 = vand.u32 %v204, 4294901760
        %689 = vmatmul.mubr.f32.gmra.mxu0 %v688
        %v690 = vpop.f32.mrf.mxu0
        %v691 = vadd.f32 %v590, %v690
        %v692 = vpop.f32.mrf.mxu0
        %693 = vmatprep.mubr.f32.mxu0 0.0
        %v694 = vand.u32 %v207, 4294901760
        %695 = vmatmul.mubr.f32.gmra.mxu0 %v694
        %v696 = vpop.f32.mrf.mxu0
        %v697 = vadd.f32 %v598, %v696
        %v698 = vpop.f32.mrf.mxu0
        %699 = vmatprep.mubr.f32.mxu0 0.0
        %v700 = vand.u32 %v210, 4294901760
        %701 = vmatmul.mubr.f32.gmra.mxu0 %v700
        %v702 = vpop.f32.mrf.mxu0
        %v703 = vadd.f32 %v606, %v702
        %v704 = vpop.f32.mrf.mxu0
        %705 = vmatprep.mubr.f32.mxu0 0.0
        %v706 = vand.u32 %v213, 4294901760
        %707 = vmatmul.mubr.f32.gmra.mxu0 %v706
        %v708 = vpop.f32.mrf.mxu0
        %v709 = vadd.f32 %v614, %v708
        %v710 = vpop.f32.mrf.mxu0
        %711 = vdwg.mxu0
        %712 = vmatprep.subr.mxu0 0.0
        %713 = vmatpush1.msra.mxu0 0.0
        %714 = vmatprep.subr.mxu0 0.0
        %715 = vmatpush1.msra.mxu0 0.0
        %716 = vmatprep.subr.mxu0 0.0
        %717 = vmatpush1.msra.mxu0 0.0
        %718 = vmatprep.subr.mxu0 0.0
        %719 = vmatpush1.msra.mxu0 0.0
        %720 = vmatprep.subr.mxu0 0.0
        %721 = vmatpush1.msra.mxu0 0.0
        %722 = vmatprep.subr.mxu0 0.0
        %723 = vmatpush1.msra.mxu0 0.0
        %724 = vmatprep.subr.mxu0 0.0
        %725 = vmatpush1.msra.mxu0 0.0
        %726 = vmatprep.subr.mxu0 0.0
        %727 = vmatpush1.msra.mxu0 0.0
        %728 = vmatprep.subr.mxu0 0.0
        %729 = vmatpush1.msra.mxu0 0.0
        %730 = vmatprep.subr.mxu0 0.0
        %731 = vmatpush1.msra.mxu0 0.0
        %732 = vmatprep.subr.mxu0 0.0
        %733 = vmatpush1.msra.mxu0 0.0
        %734 = vmatprep.subr.mxu0 0.0
        %735 = vmatpush1.msra.mxu0 0.0
        %736 = vmatprep.subr.mxu0 0.0
        %737 = vmatpush1.msra.mxu0 0.0
        %738 = vmatprep.subr.mxu0 0.0
        %739 = vmatpush1.msra.mxu0 0.0
        %740 = vmatprep.subr.mxu0 0.0
        %v741 = vand.u32 %v197, 4294901760
        %742 = vmatpush1.msra.mxu0 %v741
        %743 = vmatprep.subr.mxu0 0.0
        %v744 = vand.u32 %v196, 4294901760
        %745 = vmatpush1.msra.mxu0 %v744
        %746 = vmatprep.subr.mxu0 0.0
        %747 = vmatpush2.msra.mxu0 0.0
        %748 = vmatprep.subr.mxu0 0.0
        %749 = vmatpush2.msra.mxu0 0.0
        %750 = vmatprep.subr.mxu0 0.0
        %751 = vmatpush2.msra.mxu0 0.0
        %752 = vmatprep.subr.mxu0 0.0
        %753 = vmatpush2.msra.mxu0 0.0
        %754 = vmatprep.subr.mxu0 0.0
        %755 = vmatpush2.msra.mxu0 0.0
        %756 = vmatprep.subr.mxu0 0.0
        %757 = vmatpush2.msra.mxu0 0.0
        %758 = vmatprep.subr.mxu0 0.0
        %759 = vmatpush2.msra.mxu0 0.0
        %760 = vmatprep.subr.mxu0 0.0
        %761 = vmatpush2.msra.mxu0 0.0
        %762 = vmatprep.subr.mxu0 0.0
        %763 = vmatpush2.msra.mxu0 0.0
        %764 = vmatprep.subr.mxu0 0.0
        %765 = vmatpush2.msra.mxu0 0.0
        %766 = vmatprep.subr.mxu0 0.0
        %767 = vmatpush2.msra.mxu0 0.0
        %768 = vmatprep.subr.mxu0 0.0
        %769 = vmatpush2.msra.mxu0 0.0
        %770 = vmatprep.subr.mxu0 0.0
        %771 = vmatpush2.msra.mxu0 0.0
        %772 = vmatprep.subr.mxu0 0.0
        %773 = vmatpush2.msra.mxu0 0.0
        %774 = vmatprep.subr.mxu0 0.0
        %775 = vmatpush2.msra.mxu0 0.0
        %776 = vmatprep.subr.mxu0 0.0
        %777 = vmatpush2.msra.mxu0 0.0
        %778 = vmatprep.mubr.f32.mxu0 0.0
        %v779 = vand.u32 %v204, 4294901760
        %780 = vmatmul.mubr.f32.gmra.mxu0 %v779
        %v781 = vpop.f32.mrf.mxu0
        %v782 = vadd.f32 %v691, %v781
        %v783 = vpop.f32.mrf.mxu0
        %784 = vmatprep.mubr.f32.mxu0 0.0
        %v785 = vand.u32 %v207, 4294901760
        %786 = vmatmul.mubr.f32.gmra.mxu0 %v785
        %v787 = vpop.f32.mrf.mxu0
        %v788 = vadd.f32 %v697, %v787
        %v789 = vpop.f32.mrf.mxu0
        %790 = vmatprep.mubr.f32.mxu0 0.0
        %v791 = vand.u32 %v210, 4294901760
        %792 = vmatmul.mubr.f32.gmra.mxu0 %v791
        %v793 = vpop.f32.mrf.mxu0
        %v794 = vadd.f32 %v703, %v793
        %v795 = vpop.f32.mrf.mxu0
        %796 = vmatprep.mubr.f32.mxu0 0.0
        %v797 = vand.u32 %v213, 4294901760
        %798 = vmatmul.mubr.f32.gmra.mxu0 %v797
        %v799 = vpop.f32.mrf.mxu0
        %v800 = vadd.f32 %v709, %v799
        %v801 = vpop.f32.mrf.mxu0
        %802 = vdwg.mxu0
        %vm803 = vcmask 64512
        %804 = vst.msk [vmem:[%s194] sm:$0xff] %vm803, %v782
        %805 = vst.msk [vmem:[%s194 + $0x20] sm:$0xff] %vm803, %v788
        %806 = vst.msk [vmem:[%s194 + $0x40] sm:$0xff] %vm803, %v794
        %807 = vst.msk [vmem:[%s194 + $0x60] sm:$0xff] %vm803, %v800
        %812 = vrot.lane.b32.xlu0 %v782, 120
        %v813 = vpop.permute.xlu0 %812
        %814 = vrot.lane.b32.xlu0 %v788, 120
        %v815 = vpop.permute.xlu0 %814
        %816 = vrot.lane.b32.xlu0 %v794, 120
        %v817 = vpop.permute.xlu0 %816
        %818 = vrot.lane.b32.xlu0 %v800, 120
        %v819 = vpop.permute.xlu0 %818
        %s824 = scalar_lea.vmem %s194, 8 [#allocation7]
        %825 = vst.msk [vmem:[%s824] sm:$0xff] %vm803, %v813
        %826 = vst.msk [vmem:[%s824 + $0x20] sm:$0xff] %vm803, %v815
        %827 = vst.msk [vmem:[%s824 + $0x40] sm:$0xff] %vm803, %v817
        %828 = vst.msk [vmem:[%s824 + $0x60] sm:$0xff] %vm803, %v819
        %v829 = vld [vmem:[%s170] sm:$0xff]
        %v830 = vld [vmem:[%s170 + $0x8] sm:$0xff]
        %v831 = vld [vmem:[%s170 + $0x10] sm:$0xff]
        %v832 = vld [vmem:[%s170 + $0x18] sm:$0xff]
        %837 = vrot.lane.b32.xlu0 %v829, 112
        %v838 = vpop.permute.xlu0 %837
        %839 = vrot.lane.b32.xlu0 %v830, 112
        %v840 = vpop.permute.xlu0 %839
        %841 = vrot.lane.b32.xlu0 %v831, 112
        %v842 = vpop.permute.xlu0 %841
        %843 = vrot.lane.b32.xlu0 %v832, 112
        %v844 = vpop.permute.xlu0 %843
        %v845 = vsel %vm202, %v838, 0
        %v847 = vsel %vm202, %v840, 0
        %v849 = vsel %vm202, %v842, 0
        %v851 = vsel %vm202, %v844, 0
        %853 = vmatprep.subr.mxu0 0.0
        %854 = vmatpush1.msra.mxu0 0.0
        %855 = vmatprep.subr.mxu0 0.0
        %856 = vmatpush1.msra.mxu0 0.0
        %857 = vmatprep.subr.mxu0 0.0
        %858 = vmatpush1.msra.mxu0 0.0
        %859 = vmatprep.subr.mxu0 0.0
        %860 = vmatpush1.msra.mxu0 0.0
        %861 = vmatprep.subr.mxu0 0.0
        %862 = vmatpush1.msra.mxu0 0.0
        %863 = vmatprep.subr.mxu0 0.0
        %864 = vmatpush1.msra.mxu0 0.0
        %865 = vmatprep.subr.mxu0 0.0
        %866 = vmatpush1.msra.mxu0 0.0
        %867 = vmatprep.subr.mxu0 0.0
        %868 = vmatpush1.msra.mxu0 0.0
        %869 = vmatprep.subr.mxu0 0.0
        %870 = vmatpush1.msra.mxu0 0.0
        %871 = vmatprep.subr.mxu0 0.0
        %872 = vmatpush1.msra.mxu0 0.0
        %873 = vmatprep.subr.mxu0 0.0
        %874 = vmatpush1.msra.mxu0 0.0
        %875 = vmatprep.subr.mxu0 0.0
        %876 = vmatpush1.msra.mxu0 0.0
        %877 = vmatprep.subr.mxu0 0.0
        %878 = vmatpush1.msra.mxu0 0.0
        %879 = vmatprep.subr.mxu0 0.0
        %880 = vmatpush1.msra.mxu0 0.0
        %881 = vmatprep.subr.mxu0 0.0
        %v882 = vand.u32 %v197, 4294901760
        %883 = vmatpush1.msra.mxu0 %v882
        %884 = vmatprep.subr.mxu0 0.0
        %v885 = vand.u32 %v196, 4294901760
        %886 = vmatpush1.msra.mxu0 %v885
        %887 = vmatprep.subr.mxu0 0.0
        %888 = vmatpush2.msra.mxu0 0.0
        %889 = vmatprep.subr.mxu0 0.0
        %890 = vmatpush2.msra.mxu0 0.0
        %891 = vmatprep.subr.mxu0 0.0
        %892 = vmatpush2.msra.mxu0 0.0
        %893 = vmatprep.subr.mxu0 0.0
        %894 = vmatpush2.msra.mxu0 0.0
        %895 = vmatprep.subr.mxu0 0.0
        %896 = vmatpush2.msra.mxu0 0.0
        %897 = vmatprep.subr.mxu0 0.0
        %898 = vmatpush2.msra.mxu0 0.0
        %899 = vmatprep.subr.mxu0 0.0
        %900 = vmatpush2.msra.mxu0 0.0
        %901 = vmatprep.subr.mxu0 0.0
        %902 = vmatpush2.msra.mxu0 0.0
        %903 = vmatprep.subr.mxu0 0.0
        %904 = vmatpush2.msra.mxu0 0.0
        %905 = vmatprep.subr.mxu0 0.0
        %906 = vmatpush2.msra.mxu0 0.0
        %907 = vmatprep.subr.mxu0 0.0
        %908 = vmatpush2.msra.mxu0 0.0
        %909 = vmatprep.subr.mxu0 0.0
        %910 = vmatpush2.msra.mxu0 0.0
        %911 = vmatprep.subr.mxu0 0.0
        %912 = vmatpush2.msra.mxu0 0.0
        %913 = vmatprep.subr.mxu0 0.0
        %914 = vmatpush2.msra.mxu0 0.0
        %915 = vmatprep.subr.mxu0 0.0
        %916 = vmatpush2.msra.mxu0 0.0
        %917 = vmatprep.subr.mxu0 0.0
        %918 = vmatpush2.msra.mxu0 0.0
        %919 = vmatprep.mubr.f32.mxu0 0.0
        %v920 = vand.u32 %v845, 4294901760
        %v921 = vsub.f32 %v845, %v920
        %v922 = vand.u32 %v921, 4294901760
        %v923 = vsub.f32 %v921, %v922
        %v924 = vand.u32 %v923, 4294901760
        %925 = vmatmul.mubr.f32.gmra.mxu0 %v924
        %v926 = vpop.f32.mrf.mxu0
        %v927 = vadd.f32 0.0, %v926
        %v928 = vpop.f32.mrf.mxu0
        %929 = vmatprep.mubr.f32.mxu0 0.0
        %v930 = vand.u32 %v847, 4294901760
        %v931 = vsub.f32 %v847, %v930
        %v932 = vand.u32 %v931, 4294901760
        %v933 = vsub.f32 %v931, %v932
        %v934 = vand.u32 %v933, 4294901760
        %935 = vmatmul.mubr.f32.gmra.mxu0 %v934
        %v936 = vpop.f32.mrf.mxu0
        %v937 = vadd.f32 0.0, %v936
        %v938 = vpop.f32.mrf.mxu0
        %939 = vmatprep.mubr.f32.mxu0 0.0
        %v940 = vand.u32 %v849, 4294901760
        %v941 = vsub.f32 %v849, %v940
        %v942 = vand.u32 %v941, 4294901760
        %v943 = vsub.f32 %v941, %v942
        %v944 = vand.u32 %v943, 4294901760
        %945 = vmatmul.mubr.f32.gmra.mxu0 %v944
        %v946 = vpop.f32.mrf.mxu0
        %v947 = vadd.f32 0.0, %v946
        %v948 = vpop.f32.mrf.mxu0
        %949 = vmatprep.mubr.f32.mxu0 0.0
        %v950 = vand.u32 %v851, 4294901760
        %v951 = vsub.f32 %v851, %v950
        %v952 = vand.u32 %v951, 4294901760
        %v953 = vsub.f32 %v951, %v952
        %v954 = vand.u32 %v953, 4294901760
        %955 = vmatmul.mubr.f32.gmra.mxu0 %v954
        %v956 = vpop.f32.mrf.mxu0
        %v957 = vadd.f32 0.0, %v956
        %v958 = vpop.f32.mrf.mxu0
        %959 = vdwg.mxu0
        %960 = vmatprep.subr.mxu0 0.0
        %961 = vmatpush1.msra.mxu0 0.0
        %962 = vmatprep.subr.mxu0 0.0
        %963 = vmatpush1.msra.mxu0 0.0
        %964 = vmatprep.subr.mxu0 0.0
        %965 = vmatpush1.msra.mxu0 0.0
        %966 = vmatprep.subr.mxu0 0.0
        %967 = vmatpush1.msra.mxu0 0.0
        %968 = vmatprep.subr.mxu0 0.0
        %969 = vmatpush1.msra.mxu0 0.0
        %970 = vmatprep.subr.mxu0 0.0
        %971 = vmatpush1.msra.mxu0 0.0
        %972 = vmatprep.subr.mxu0 0.0
        %973 = vmatpush1.msra.mxu0 0.0
        %974 = vmatprep.subr.mxu0 0.0
        %975 = vmatpush1.msra.mxu0 0.0
        %976 = vmatprep.subr.mxu0 0.0
        %977 = vmatpush1.msra.mxu0 0.0
        %978 = vmatprep.subr.mxu0 0.0
        %979 = vmatpush1.msra.mxu0 0.0
        %980 = vmatprep.subr.mxu0 0.0
        %981 = vmatpush1.msra.mxu0 0.0
        %982 = vmatprep.subr.mxu0 0.0
        %983 = vmatpush1.msra.mxu0 0.0
        %984 = vmatprep.subr.mxu0 0.0
        %985 = vmatpush1.msra.mxu0 0.0
        %986 = vmatprep.subr.mxu0 0.0
        %987 = vmatpush1.msra.mxu0 0.0
        %988 = vmatprep.subr.mxu0 0.0
        %v989 = vand.u32 %v197, 4294901760
        %v990 = vsub.f32 %v197, %v989
        %v991 = vand.u32 %v990, 4294901760
        %v992 = vsub.f32 %v990, %v991
        %v993 = vand.u32 %v992, 4294901760
        %994 = vmatpush1.msra.mxu0 %v993
        %995 = vmatprep.subr.mxu0 0.0
        %v996 = vand.u32 %v196, 4294901760
        %v997 = vsub.f32 %v196, %v996
        %v998 = vand.u32 %v997, 4294901760
        %v999 = vsub.f32 %v997, %v998
        %v1000 = vand.u32 %v999, 4294901760
        %1001 = vmatpush1.msra.mxu0 %v1000
        %1002 = vmatprep.subr.mxu0 0.0
        %1003 = vmatpush2.msra.mxu0 0.0
        %1004 = vmatprep.subr.mxu0 0.0
        %1005 = vmatpush2.msra.mxu0 0.0
        %1006 = vmatprep.subr.mxu0 0.0
        %1007 = vmatpush2.msra.mxu0 0.0
        %1008 = vmatprep.subr.mxu0 0.0
        %1009 = vmatpush2.msra.mxu0 0.0
        %1010 = vmatprep.subr.mxu0 0.0
        %1011 = vmatpush2.msra.mxu0 0.0
        %1012 = vmatprep.subr.mxu0 0.0
        %1013 = vmatpush2.msra.mxu0 0.0
        %1014 = vmatprep.subr.mxu0 0.0
        %1015 = vmatpush2.msra.mxu0 0.0
        %1016 = vmatprep.subr.mxu0 0.0
        %1017 = vmatpush2.msra.mxu0 0.0
        %1018 = vmatprep.subr.mxu0 0.0
        %1019 = vmatpush2.msra.mxu0 0.0
        %1020 = vmatprep.subr.mxu0 0.0
        %1021 = vmatpush2.msra.mxu0 0.0
        %1022 = vmatprep.subr.mxu0 0.0
        %1023 = vmatpush2.msra.mxu0 0.0
        %1024 = vmatprep.subr.mxu0 0.0
        %1025 = vmatpush2.msra.mxu0 0.0
        %1026 = vmatprep.subr.mxu0 0.0
        %1027 = vmatpush2.msra.mxu0 0.0
        %1028 = vmatprep.subr.mxu0 0.0
        %1029 = vmatpush2.msra.mxu0 0.0
        %1030 = vmatprep.subr.mxu0 0.0
        %1031 = vmatpush2.msra.mxu0 0.0
        %1032 = vmatprep.subr.mxu0 0.0
        %1033 = vmatpush2.msra.mxu0 0.0
        %1034 = vmatprep.mubr.f32.mxu0 0.0
        %v1035 = vand.u32 %v845, 4294901760
        %1036 = vmatmul.mubr.f32.gmra.mxu0 %v1035
        %v1037 = vpop.f32.mrf.mxu0
        %v1038 = vadd.f32 %v927, %v1037
        %v1039 = vpop.f32.mrf.mxu0
        %1040 = vmatprep.mubr.f32.mxu0 0.0
        %v1041 = vand.u32 %v847, 4294901760
        %1042 = vmatmul.mubr.f32.gmra.mxu0 %v1041
        %v1043 = vpop.f32.mrf.mxu0
        %v1044 = vadd.f32 %v937, %v1043
        %v1045 = vpop.f32.mrf.mxu0
        %1046 = vmatprep.mubr.f32.mxu0 0.0
        %v1047 = vand.u32 %v849, 4294901760
        %1048 = vmatmul.mubr.f32.gmra.mxu0 %v1047
        %v1049 = vpop.f32.mrf.mxu0
        %v1050 = vadd.f32 %v947, %v1049
        %v1051 = vpop.f32.mrf.mxu0
        %1052 = vmatprep.mubr.f32.mxu0 0.0
        %v1053 = vand.u32 %v851, 4294901760
        %1054 = vmatmul.mubr.f32.gmra.mxu0 %v1053
        %v1055 = vpop.f32.mrf.mxu0
        %v1056 = vadd.f32 %v957, %v1055
        %v1057 = vpop.f32.mrf.mxu0
        %1058 = vdwg.mxu0
        %1059 = vmatprep.subr.mxu0 0.0
        %1060 = vmatpush1.msra.mxu0 0.0
        %1061 = vmatprep.subr.mxu0 0.0
        %1062 = vmatpush1.msra.mxu0 0.0
        %1063 = vmatprep.subr.mxu0 0.0
        %1064 = vmatpush1.msra.mxu0 0.0
        %1065 = vmatprep.subr.mxu0 0.0
        %1066 = vmatpush1.msra.mxu0 0.0
        %1067 = vmatprep.subr.mxu0 0.0
        %1068 = vmatpush1.msra.mxu0 0.0
        %1069 = vmatprep.subr.mxu0 0.0
        %1070 = vmatpush1.msra.mxu0 0.0
        %1071 = vmatprep.subr.mxu0 0.0
        %1072 = vmatpush1.msra.mxu0 0.0
        %1073 = vmatprep.subr.mxu0 0.0
        %1074 = vmatpush1.msra.mxu0 0.0
        %1075 = vmatprep.subr.mxu0 0.0
        %1076 = vmatpush1.msra.mxu0 0.0
        %1077 = vmatprep.subr.mxu0 0.0
        %1078 = vmatpush1.msra.mxu0 0.0
        %1079 = vmatprep.subr.mxu0 0.0
        %1080 = vmatpush1.msra.mxu0 0.0
        %1081 = vmatprep.subr.mxu0 0.0
        %1082 = vmatpush1.msra.mxu0 0.0
        %1083 = vmatprep.subr.mxu0 0.0
        %1084 = vmatpush1.msra.mxu0 0.0
        %1085 = vmatprep.subr.mxu0 0.0
        %1086 = vmatpush1.msra.mxu0 0.0
        %1087 = vmatprep.subr.mxu0 0.0
        %v1088 = vand.u32 %v197, 4294901760
        %v1089 = vsub.f32 %v197, %v1088
        %1090 = vmatpush1.msra.mxu0 %v1089
        %1091 = vmatprep.subr.mxu0 0.0
        %v1092 = vand.u32 %v196, 4294901760
        %v1093 = vsub.f32 %v196, %v1092
        %1094 = vmatpush1.msra.mxu0 %v1093
        %1095 = vmatprep.subr.mxu0 0.0
        %1096 = vmatpush2.msra.mxu0 0.0
        %1097 = vmatprep.subr.mxu0 0.0
        %1098 = vmatpush2.msra.mxu0 0.0
        %1099 = vmatprep.subr.mxu0 0.0
        %1100 = vmatpush2.msra.mxu0 0.0
        %1101 = vmatprep.subr.mxu0 0.0
        %1102 = vmatpush2.msra.mxu0 0.0
        %1103 = vmatprep.subr.mxu0 0.0
        %1104 = vmatpush2.msra.mxu0 0.0
        %1105 = vmatprep.subr.mxu0 0.0
        %1106 = vmatpush2.msra.mxu0 0.0
        %1107 = vmatprep.subr.mxu0 0.0
        %1108 = vmatpush2.msra.mxu0 0.0
        %1109 = vmatprep.subr.mxu0 0.0
        %1110 = vmatpush2.msra.mxu0 0.0
        %1111 = vmatprep.subr.mxu0 0.0
        %1112 = vmatpush2.msra.mxu0 0.0
        %1113 = vmatprep.subr.mxu0 0.0
        %1114 = vmatpush2.msra.mxu0 0.0
        %1115 = vmatprep.subr.mxu0 0.0
        %1116 = vmatpush2.msra.mxu0 0.0
        %1117 = vmatprep.subr.mxu0 0.0
        %1118 = vmatpush2.msra.mxu0 0.0
        %1119 = vmatprep.subr.mxu0 0.0
        %1120 = vmatpush2.msra.mxu0 0.0
        %1121 = vmatprep.subr.mxu0 0.0
        %1122 = vmatpush2.msra.mxu0 0.0
        %1123 = vmatprep.subr.mxu0 0.0
        %1124 = vmatpush2.msra.mxu0 0.0
        %1125 = vmatprep.subr.mxu0 0.0
        %1126 = vmatpush2.msra.mxu0 0.0
        %1127 = vmatprep.mubr.f32.mxu0 0.0
        %v1128 = vand.u32 %v845, 4294901760
        %v1129 = vsub.f32 %v845, %v1128
        %1130 = vmatmul.mubr.f32.gmra.mxu0 %v1129
        %v1131 = vpop.f32.mrf.mxu0
        %v1132 = vadd.f32 %v1038, %v1131
        %v1133 = vpop.f32.mrf.mxu0
        %1134 = vmatprep.mubr.f32.mxu0 0.0
        %v1135 = vand.u32 %v847, 4294901760
        %v1136 = vsub.f32 %v847, %v1135
        %1137 = vmatmul.mubr.f32.gmra.mxu0 %v1136
        %v1138 = vpop.f32.mrf.mxu0
        %v1139 = vadd.f32 %v1044, %v1138
        %v1140 = vpop.f32.mrf.mxu0
        %1141 = vmatprep.mubr.f32.mxu0 0.0
        %v1142 = vand.u32 %v849, 4294901760
        %v1143 = vsub.f32 %v849, %v1142
        %1144 = vmatmul.mubr.f32.gmra.mxu0 %v1143
        %v1145 = vpop.f32.mrf.mxu0
        %v1146 = vadd.f32 %v1050, %v1145
        %v1147 = vpop.f32.mrf.mxu0
        %1148 = vmatprep.mubr.f32.mxu0 0.0
        %v1149 = vand.u32 %v851, 4294901760
        %v1150 = vsub.f32 %v851, %v1149
        %1151 = vmatmul.mubr.f32.gmra.mxu0 %v1150
        %v1152 = vpop.f32.mrf.mxu0
        %v1153 = vadd.f32 %v1056, %v1152
        %v1154 = vpop.f32.mrf.mxu0
        %1155 = vdwg.mxu0
        %1156 = vmatprep.subr.mxu0 0.0
        %1157 = vmatpush1.msra.mxu0 0.0
        %1158 = vmatprep.subr.mxu0 0.0
        %1159 = vmatpush1.msra.mxu0 0.0
        %1160 = vmatprep.subr.mxu0 0.0
        %1161 = vmatpush1.msra.mxu0 0.0
        %1162 = vmatprep.subr.mxu0 0.0
        %1163 = vmatpush1.msra.mxu0 0.0
        %1164 = vmatprep.subr.mxu0 0.0
        %1165 = vmatpush1.msra.mxu0 0.0
        %1166 = vmatprep.subr.mxu0 0.0
        %1167 = vmatpush1.msra.mxu0 0.0
        %1168 = vmatprep.subr.mxu0 0.0
        %1169 = vmatpush1.msra.mxu0 0.0
        %1170 = vmatprep.subr.mxu0 0.0
        %1171 = vmatpush1.msra.mxu0 0.0
        %1172 = vmatprep.subr.mxu0 0.0
        %1173 = vmatpush1.msra.mxu0 0.0
        %1174 = vmatprep.subr.mxu0 0.0
        %1175 = vmatpush1.msra.mxu0 0.0
        %1176 = vmatprep.subr.mxu0 0.0
        %1177 = vmatpush1.msra.mxu0 0.0
        %1178 = vmatprep.subr.mxu0 0.0
        %1179 = vmatpush1.msra.mxu0 0.0
        %1180 = vmatprep.subr.mxu0 0.0
        %1181 = vmatpush1.msra.mxu0 0.0
        %1182 = vmatprep.subr.mxu0 0.0
        %1183 = vmatpush1.msra.mxu0 0.0
        %1184 = vmatprep.subr.mxu0 0.0
        %v1185 = vand.u32 %v197, 4294901760
        %1186 = vmatpush1.msra.mxu0 %v1185
        %1187 = vmatprep.subr.mxu0 0.0
        %v1188 = vand.u32 %v196, 4294901760
        %1189 = vmatpush1.msra.mxu0 %v1188
        %1190 = vmatprep.subr.mxu0 0.0
        %1191 = vmatpush2.msra.mxu0 0.0
        %1192 = vmatprep.subr.mxu0 0.0
        %1193 = vmatpush2.msra.mxu0 0.0
        %1194 = vmatprep.subr.mxu0 0.0
        %1195 = vmatpush2.msra.mxu0 0.0
        %1196 = vmatprep.subr.mxu0 0.0
        %1197 = vmatpush2.msra.mxu0 0.0
        %1198 = vmatprep.subr.mxu0 0.0
        %1199 = vmatpush2.msra.mxu0 0.0
        %1200 = vmatprep.subr.mxu0 0.0
        %1201 = vmatpush2.msra.mxu0 0.0
        %1202 = vmatprep.subr.mxu0 0.0
        %1203 = vmatpush2.msra.mxu0 0.0
        %1204 = vmatprep.subr.mxu0 0.0
        %1205 = vmatpush2.msra.mxu0 0.0
        %1206 = vmatprep.subr.mxu0 0.0
        %1207 = vmatpush2.msra.mxu0 0.0
        %1208 = vmatprep.subr.mxu0 0.0
        %1209 = vmatpush2.msra.mxu0 0.0
        %1210 = vmatprep.subr.mxu0 0.0
        %1211 = vmatpush2.msra.mxu0 0.0
        %1212 = vmatprep.subr.mxu0 0.0
        %1213 = vmatpush2.msra.mxu0 0.0
        %1214 = vmatprep.subr.mxu0 0.0
        %1215 = vmatpush2.msra.mxu0 0.0
        %1216 = vmatprep.subr.mxu0 0.0
        %1217 = vmatpush2.msra.mxu0 0.0
        %1218 = vmatprep.subr.mxu0 0.0
        %1219 = vmatpush2.msra.mxu0 0.0
        %1220 = vmatprep.subr.mxu0 0.0
        %1221 = vmatpush2.msra.mxu0 0.0
        %1222 = vmatprep.mubr.f32.mxu0 0.0
        %v1223 = vand.u32 %v845, 4294901760
        %v1224 = vsub.f32 %v845, %v1223
        %v1225 = vand.u32 %v1224, 4294901760
        %1226 = vmatmul.mubr.f32.gmra.mxu0 %v1225
        %v1227 = vpop.f32.mrf.mxu0
        %v1228 = vadd.f32 %v1132, %v1227
        %v1229 = vpop.f32.mrf.mxu0
        %1230 = vmatprep.mubr.f32.mxu0 0.0
        %v1231 = vand.u32 %v847, 4294901760
        %v1232 = vsub.f32 %v847, %v1231
        %v1233 = vand.u32 %v1232, 4294901760
        %1234 = vmatmul.mubr.f32.gmra.mxu0 %v1233
        %v1235 = vpop.f32.mrf.mxu0
        %v1236 = vadd.f32 %v1139, %v1235
        %v1237 = vpop.f32.mrf.mxu0
        %1238 = vmatprep.mubr.f32.mxu0 0.0
        %v1239 = vand.u32 %v849, 4294901760
        %v1240 = vsub.f32 %v849, %v1239
        %v1241 = vand.u32 %v1240, 4294901760
        %1242 = vmatmul.mubr.f32.gmra.mxu0 %v1241
        %v1243 = vpop.f32.mrf.mxu0
        %v1244 = vadd.f32 %v1146, %v1243
        %v1245 = vpop.f32.mrf.mxu0
        %1246 = vmatprep.mubr.f32.mxu0 0.0
        %v1247 = vand.u32 %v851, 4294901760
        %v1248 = vsub.f32 %v851, %v1247
        %v1249 = vand.u32 %v1248, 4294901760
        %1250 = vmatmul.mubr.f32.gmra.mxu0 %v1249
        %v1251 = vpop.f32.mrf.mxu0
        %v1252 = vadd.f32 %v1153, %v1251
        %v1253 = vpop.f32.mrf.mxu0
        %1254 = vdwg.mxu0
        %1255 = vmatprep.subr.mxu0 0.0
        %1256 = vmatpush1.msra.mxu0 0.0
        %1257 = vmatprep.subr.mxu0 0.0
        %1258 = vmatpush1.msra.mxu0 0.0
        %1259 = vmatprep.subr.mxu0 0.0
        %1260 = vmatpush1.msra.mxu0 0.0
        %1261 = vmatprep.subr.mxu0 0.0
        %1262 = vmatpush1.msra.mxu0 0.0
        %1263 = vmatprep.subr.mxu0 0.0
        %1264 = vmatpush1.msra.mxu0 0.0
        %1265 = vmatprep.subr.mxu0 0.0
        %1266 = vmatpush1.msra.mxu0 0.0
        %1267 = vmatprep.subr.mxu0 0.0
        %1268 = vmatpush1.msra.mxu0 0.0
        %1269 = vmatprep.subr.mxu0 0.0
        %1270 = vmatpush1.msra.mxu0 0.0
        %1271 = vmatprep.subr.mxu0 0.0
        %1272 = vmatpush1.msra.mxu0 0.0
        %1273 = vmatprep.subr.mxu0 0.0
        %1274 = vmatpush1.msra.mxu0 0.0
        %1275 = vmatprep.subr.mxu0 0.0
        %1276 = vmatpush1.msra.mxu0 0.0
        %1277 = vmatprep.subr.mxu0 0.0
        %1278 = vmatpush1.msra.mxu0 0.0
        %1279 = vmatprep.subr.mxu0 0.0
        %1280 = vmatpush1.msra.mxu0 0.0
        %1281 = vmatprep.subr.mxu0 0.0
        %1282 = vmatpush1.msra.mxu0 0.0
        %1283 = vmatprep.subr.mxu0 0.0
        %v1284 = vand.u32 %v197, 4294901760
        %v1285 = vsub.f32 %v197, %v1284
        %v1286 = vand.u32 %v1285, 4294901760
        %1287 = vmatpush1.msra.mxu0 %v1286
        %1288 = vmatprep.subr.mxu0 0.0
        %v1289 = vand.u32 %v196, 4294901760
        %v1290 = vsub.f32 %v196, %v1289
        %v1291 = vand.u32 %v1290, 4294901760
        %1292 = vmatpush1.msra.mxu0 %v1291
        %1293 = vmatprep.subr.mxu0 0.0
        %1294 = vmatpush2.msra.mxu0 0.0
        %1295 = vmatprep.subr.mxu0 0.0
        %1296 = vmatpush2.msra.mxu0 0.0
        %1297 = vmatprep.subr.mxu0 0.0
        %1298 = vmatpush2.msra.mxu0 0.0
        %1299 = vmatprep.subr.mxu0 0.0
        %1300 = vmatpush2.msra.mxu0 0.0
        %1301 = vmatprep.subr.mxu0 0.0
        %1302 = vmatpush2.msra.mxu0 0.0
        %1303 = vmatprep.subr.mxu0 0.0
        %1304 = vmatpush2.msra.mxu0 0.0
        %1305 = vmatprep.subr.mxu0 0.0
        %1306 = vmatpush2.msra.mxu0 0.0
        %1307 = vmatprep.subr.mxu0 0.0
        %1308 = vmatpush2.msra.mxu0 0.0
        %1309 = vmatprep.subr.mxu0 0.0
        %1310 = vmatpush2.msra.mxu0 0.0
        %1311 = vmatprep.subr.mxu0 0.0
        %1312 = vmatpush2.msra.mxu0 0.0
        %1313 = vmatprep.subr.mxu0 0.0
        %1314 = vmatpush2.msra.mxu0 0.0
        %1315 = vmatprep.subr.mxu0 0.0
        %1316 = vmatpush2.msra.mxu0 0.0
        %1317 = vmatprep.subr.mxu0 0.0
        %1318 = vmatpush2.msra.mxu0 0.0
        %1319 = vmatprep.subr.mxu0 0.0
        %1320 = vmatpush2.msra.mxu0 0.0
        %1321 = vmatprep.subr.mxu0 0.0
        %1322 = vmatpush2.msra.mxu0 0.0
        %1323 = vmatprep.subr.mxu0 0.0
        %1324 = vmatpush2.msra.mxu0 0.0
        %1325 = vmatprep.mubr.f32.mxu0 0.0
        %v1326 = vand.u32 %v845, 4294901760
        %1327 = vmatmul.mubr.f32.gmra.mxu0 %v1326
        %v1328 = vpop.f32.mrf.mxu0
        %v1329 = vadd.f32 %v1228, %v1328
        %v1330 = vpop.f32.mrf.mxu0
        %1331 = vmatprep.mubr.f32.mxu0 0.0
        %v1332 = vand.u32 %v847, 4294901760
        %1333 = vmatmul.mubr.f32.gmra.mxu0 %v1332
        %v1334 = vpop.f32.mrf.mxu0
        %v1335 = vadd.f32 %v1236, %v1334
        %v1336 = vpop.f32.mrf.mxu0
        %1337 = vmatprep.mubr.f32.mxu0 0.0
        %v1338 = vand.u32 %v849, 4294901760
        %1339 = vmatmul.mubr.f32.gmra.mxu0 %v1338
        %v1340 = vpop.f32.mrf.mxu0
        %v1341 = vadd.f32 %v1244, %v1340
        %v1342 = vpop.f32.mrf.mxu0
        %1343 = vmatprep.mubr.f32.mxu0 0.0
        %v1344 = vand.u32 %v851, 4294901760
        %1345 = vmatmul.mubr.f32.gmra.mxu0 %v1344
        %v1346 = vpop.f32.mrf.mxu0
        %v1347 = vadd.f32 %v1252, %v1346
        %v1348 = vpop.f32.mrf.mxu0
        %1349 = vdwg.mxu0
        %1350 = vmatprep.subr.mxu0 0.0
        %1351 = vmatpush1.msra.mxu0 0.0
        %1352 = vmatprep.subr.mxu0 0.0
        %1353 = vmatpush1.msra.mxu0 0.0
        %1354 = vmatprep.subr.mxu0 0.0
        %1355 = vmatpush1.msra.mxu0 0.0
        %1356 = vmatprep.subr.mxu0 0.0
        %1357 = vmatpush1.msra.mxu0 0.0
        %1358 = vmatprep.subr.mxu0 0.0
        %1359 = vmatpush1.msra.mxu0 0.0
        %1360 = vmatprep.subr.mxu0 0.0
        %1361 = vmatpush1.msra.mxu0 0.0
        %1362 = vmatprep.subr.mxu0 0.0
        %1363 = vmatpush1.msra.mxu0 0.0
        %1364 = vmatprep.subr.mxu0 0.0
        %1365 = vmatpush1.msra.mxu0 0.0
        %1366 = vmatprep.subr.mxu0 0.0
        %1367 = vmatpush1.msra.mxu0 0.0
        %1368 = vmatprep.subr.mxu0 0.0
        %1369 = vmatpush1.msra.mxu0 0.0
        %1370 = vmatprep.subr.mxu0 0.0
        %1371 = vmatpush1.msra.mxu0 0.0
        %1372 = vmatprep.subr.mxu0 0.0
        %1373 = vmatpush1.msra.mxu0 0.0
        %1374 = vmatprep.subr.mxu0 0.0
        %1375 = vmatpush1.msra.mxu0 0.0
        %1376 = vmatprep.subr.mxu0 0.0
        %1377 = vmatpush1.msra.mxu0 0.0
        %1378 = vmatprep.subr.mxu0 0.0
        %v1379 = vand.u32 %v197, 4294901760
        %1380 = vmatpush1.msra.mxu0 %v1379
        %1381 = vmatprep.subr.mxu0 0.0
        %v1382 = vand.u32 %v196, 4294901760
        %1383 = vmatpush1.msra.mxu0 %v1382
        %1384 = vmatprep.subr.mxu0 0.0
        %1385 = vmatpush2.msra.mxu0 0.0
        %1386 = vmatprep.subr.mxu0 0.0
        %1387 = vmatpush2.msra.mxu0 0.0
        %1388 = vmatprep.subr.mxu0 0.0
        %1389 = vmatpush2.msra.mxu0 0.0
        %1390 = vmatprep.subr.mxu0 0.0
        %1391 = vmatpush2.msra.mxu0 0.0
        %1392 = vmatprep.subr.mxu0 0.0
        %1393 = vmatpush2.msra.mxu0 0.0
        %1394 = vmatprep.subr.mxu0 0.0
        %1395 = vmatpush2.msra.mxu0 0.0
        %1396 = vmatprep.subr.mxu0 0.0
        %1397 = vmatpush2.msra.mxu0 0.0
        %1398 = vmatprep.subr.mxu0 0.0
        %1399 = vmatpush2.msra.mxu0 0.0
        %1400 = vmatprep.subr.mxu0 0.0
        %1401 = vmatpush2.msra.mxu0 0.0
        %1402 = vmatprep.subr.mxu0 0.0
        %1403 = vmatpush2.msra.mxu0 0.0
        %1404 = vmatprep.subr.mxu0 0.0
        %1405 = vmatpush2.msra.mxu0 0.0
        %1406 = vmatprep.subr.mxu0 0.0
        %1407 = vmatpush2.msra.mxu0 0.0
        %1408 = vmatprep.subr.mxu0 0.0
        %1409 = vmatpush2.msra.mxu0 0.0
        %1410 = vmatprep.subr.mxu0 0.0
        %1411 = vmatpush2.msra.mxu0 0.0
        %1412 = vmatprep.subr.mxu0 0.0
        %1413 = vmatpush2.msra.mxu0 0.0
        %1414 = vmatprep.subr.mxu0 0.0
        %1415 = vmatpush2.msra.mxu0 0.0
        %1416 = vmatprep.mubr.f32.mxu0 0.0
        %v1417 = vand.u32 %v845, 4294901760
        %1418 = vmatmul.mubr.f32.gmra.mxu0 %v1417
        %v1419 = vpop.f32.mrf.mxu0
        %v1420 = vadd.f32 %v1329, %v1419
        %v1421 = vpop.f32.mrf.mxu0
        %1422 = vmatprep.mubr.f32.mxu0 0.0
        %v1423 = vand.u32 %v847, 4294901760
        %1424 = vmatmul.mubr.f32.gmra.mxu0 %v1423
        %v1425 = vpop.f32.mrf.mxu0
        %v1426 = vadd.f32 %v1335, %v1425
        %v1427 = vpop.f32.mrf.mxu0
        %1428 = vmatprep.mubr.f32.mxu0 0.0
        %v1429 = vand.u32 %v849, 4294901760
        %1430 = vmatmul.mubr.f32.gmra.mxu0 %v1429
        %v1431 = vpop.f32.mrf.mxu0
        %v1432 = vadd.f32 %v1341, %v1431
        %v1433 = vpop.f32.mrf.mxu0
        %1434 = vmatprep.mubr.f32.mxu0 0.0
        %v1435 = vand.u32 %v851, 4294901760
        %1436 = vmatmul.mubr.f32.gmra.mxu0 %v1435
        %v1437 = vpop.f32.mrf.mxu0
        %v1438 = vadd.f32 %v1347, %v1437
        %v1439 = vpop.f32.mrf.mxu0
        %1440 = vdwg.mxu0
        %s1441 = scalar_lea.vmem %s194, 16 [#allocation7]
        %1442 = vst.msk [vmem:[%s1441] sm:$0xff] %vm803, %v1420
        %1443 = vst.msk [vmem:[%s1441 + $0x20] sm:$0xff] %vm803, %v1426
        %1444 = vst.msk [vmem:[%s1441 + $0x40] sm:$0xff] %vm803, %v1432
        %1445 = vst.msk [vmem:[%s1441 + $0x60] sm:$0xff] %vm803, %v1438
        %1450 = vrot.lane.b32.xlu0 %v1420, 120
        %v1451 = vpop.permute.xlu0 %1450
        %1452 = vrot.lane.b32.xlu0 %v1426, 120
        %v1453 = vpop.permute.xlu0 %1452
        %1454 = vrot.lane.b32.xlu0 %v1432, 120
        %v1455 = vpop.permute.xlu0 %1454
        %1456 = vrot.lane.b32.xlu0 %v1438, 120
        %v1457 = vpop.permute.xlu0 %1456
        %s1462 = scalar_lea.vmem %s194, 24 [#allocation7]
        %1463 = vst.msk [vmem:[%s1462] sm:$0xff] %vm803, %v1451
        %1464 = vst.msk [vmem:[%s1462 + $0x20] sm:$0xff] %vm803, %v1453
        %1465 = vst.msk [vmem:[%s1462 + $0x40] sm:$0xff] %vm803, %v1455
        %1466 = vst.msk [vmem:[%s1462 + $0x60] sm:$0xff] %vm803, %v1457
        %s1467 = sand.u32 %s91, 1
        %s1468 = scalar_lea.sflag [#allocation4], %s1467
        %s1469 = sand.u32 %s91, 1
        %s1470 = smul.addr %s1469, 128
        %s1471 = scalar_lea.vmem [#allocation7], %s1470
        // Predicated region
        $region37: #{tpu_custom_call.1} parent=27 // pred_check
          %p1472 = pneg %p101
        $region38: #{tpu_custom_call.1} parent=27 // pred_check_branch
          %1474 = sbr.rel (%p1472) target = $region40
        $region39: #{tpu_custom_call.1} parent=27 // pred_region
          %s1475 = smul.u32 4, %s25
          %s1477 = ssub.s32 2048, 2048
          %1478 = vsyncadd %s1468, %s1477
          %s1479 = smul.addr %s1475, 4
          %s1480 = smul.addr %s24, 16
          %s1481 = sadd.s32 %s1479, %s1480
          %s1482 = smul.addr %s1481, 128
          %s1483 = scalar_lea.hbm %s2, %s1482
          %s1484 = sshll.u32 %s1471, 4
          %s1485 = int_to_ptr.vmem [resolvable:$true] %s1484
          %1490 = dma.vmem_to_hbm [thread:$0]  %s1485, 2048, %s1483, %s1468, 128, 128, 8
        $region40: #{tpu_custom_call.1} parent=27 // pred_fallthru
          _
      $region28: #{tpu_custom_call.1} parent=5 // pred_fallthru
        _
      %p1491 = scmp.le.s32.totalorder 2, %s15
      // Predicated region
      $region41: #{tpu_custom_call.1} parent=5 // pred_check
        %p1492 = pneg %p1491
      $region42: #{tpu_custom_call.1} parent=5 // pred_check_branch
        %1494 = sbr.rel (%p1492) target = $region44
      $region43: #{tpu_custom_call.1} parent=5 // pred_region
        %s1495 = ssub.s32 %s15, 2
        // Predicated region
        $region45: #{tpu_custom_call.1} parent=43 // pred_check
          %p1496 = pneg %p107
        $region46: #{tpu_custom_call.1} parent=43 // pred_check_branch
          %1498 = sbr.rel (%p1496) target = $region48
        $region47: #{tpu_custom_call.1} parent=43 // pred_region
          %s1499 = sand.u32 %s92, 1
          %s1500 = scalar_lea.sflag [#allocation4], %s1499
          %s1501 = sand.u32 %s92, 1
          %s1502 = smul.addr %s1501, 128
          %s1503 = scalar_lea.vmem [#allocation7], %s1502
          %1504 = dma.done %s1500, 2048
        $region48: #{tpu_custom_call.1} parent=43 // pred_fallthru
          _
      $region44: #{tpu_custom_call.1} parent=5 // pred_fallthru
        _
    $region6: #{tpu_custom_call.1} parent=1 // loop_footer
      %s19 = sadd.s32 1, %s15
    $region7: #{tpu_custom_call.1} parent=1 // loop_footer_branch
      %14 = sbr.rel target = $region3
    $region8: #{tpu_custom_call.1} parent=1 // loop_exit
      _
    %1505 = vsyncpa [#allocation3], 1
    %s1506 = scalar_lea.sflag [#allocation3], 1
    %1507 = vsyncpa %s1506, 1
    %1508 = vsyncpa [#allocation6], 1
    %1509 = vsyncpa [#allocation4], 1
    %s1510 = scalar_lea.sflag [#allocation4], 1
    %1511 = vsyncpa %s1510, 1

</llo_original>
